<compile_context>
chip_gen: v7x
topology: tpu7x:2x2x1
jax: 0.10.0
libtpu: 0.0.40
codegen_flags: <defaults>
</compile_context>

<pallas_src>
import functools
import math

import jax
import jax.numpy as jnp
from jax import lax
from jax.experimental import pallas as pl
from jax.experimental.pallas import tpu as pltpu


# ---------------------------------------------------------------------------
# Fused kernel: StyledConv1 + noise1 + act1 + StyledConv2 + noise2 + act2
# All activations use the channels-interleaved dense layout a[h, w*C + c].
# ---------------------------------------------------------------------------
def _styled_block_kernel(x_ref, m1_ref, m2_ref, w1_ref, b1_ref, w2_ref, b2_ref,
                         n1_ref, n2_ref, nw_ref, o_ref, pad1_ref, pad2_ref,
                         *, H, W, C1, C2, slope):
    f32, bf16 = jnp.float32, jnp.bfloat16

    def conv3x3(pad_ref, w_ref, C):
        # pad_ref: (H+2, (W+2)*C) zero-padded dense activations (f32 VMEM scratch)
        # w_ref:   (3, 3, W*C, W*C2) block-diagonal bf16 weights (conv scale folded in)
        acc = jnp.zeros((H, W * C2), f32)
        for dx in range(3):                                  # hoist the lane shift (3x not 9x)
            col = pad_ref[:, pl.ds(dx * C, W * C)]           # (H+2, W*C)
            for dy in range(3):
                lhs = col[dy:dy + H].astype(bf16)            # (H, W*C) bf16 -> MXU
                acc = acc + jnp.dot(lhs, w_ref[dy, dx],
                                    preferred_element_type=f32)
        return acc

    def leaky(v):
        return jnp.where(v >= 0, v, slope * v)

    # ---- stage 1: StyledConv(C1 -> C2) + NoiseInjection + LeakyReLU(0.2) ----
    xm = x_ref[0] * m1_ref[0]                                # per-in-channel style modulation
    pad1_ref[...] = jnp.zeros_like(pad1_ref)                 # SAME padding done in VMEM
    pad1_ref[pl.ds(1, H), pl.ds(C1, W * C1)] = xm
    y = conv3x3(pad1_ref, w1_ref, C1) + b1_ref[...]          # conv + (bias * conv_scale)
    y = y + nw_ref[0] * n1_ref[0]                            # noise injection (SMEM scalar)
    y = leaky(y)

    # ---- stage 2: StyledConv(C2 -> C2) + NoiseInjection + LeakyReLU(0.2) ----
    ym = y * m2_ref[0]
    pad2_ref[...] = jnp.zeros_like(pad2_ref)
    pad2_ref[pl.ds(1, H), pl.ds(C2, W * C2)] = ym
    y = conv3x3(pad2_ref, w2_ref, C2) + b2_ref[...]
    y = y + nw_ref[1] * n2_ref[0]
    y = leaky(y)

    o_ref[0] = y.astype(o_ref.dtype)                         # lane-dense (H, W*C2) store


def _styled_block_call(x_dense, mod1_t, mod2_t, n1_dense, n2_dense, prep,
                       H, W, C1, C2):
    B = x_dense.shape[0]
    kernel = functools.partial(_styled_block_kernel,
                               H=H, W=W, C1=C1, C2=C2, slope=0.2)
    grid_spec = pltpu.PrefetchScalarGridSpec(
        num_scalar_prefetch=0,
        grid=(B,),
        in_specs=[
            pl.BlockSpec((1, H, W * C1), lambda b: (b, 0, 0)),             # x (dense)
            pl.BlockSpec((1, 1, W * C1), lambda b: (b, 0, 0)),             # mod1 (tiled)
            pl.BlockSpec((1, 1, W * C2), lambda b: (b, 0, 0)),             # mod2 (tiled)
            pl.BlockSpec((3, 3, W * C1, W * C2), lambda b: (0, 0, 0, 0)),  # w1 block-diag bf16
            pl.BlockSpec((1, W * C2), lambda b: (0, 0)),                   # b1 (scaled, tiled)
            pl.BlockSpec((3, 3, W * C2, W * C2), lambda b: (0, 0, 0, 0)),  # w2 block-diag bf16
            pl.BlockSpec((1, W * C2), lambda b: (0, 0)),                   # b2 (scaled, tiled)
            pl.BlockSpec((1, H, W * C2), lambda b: (b, 0, 0)),             # noise1 (dense)
            pl.BlockSpec((1, H, W * C2), lambda b: (b, 0, 0)),             # noise2 (dense)
            pl.BlockSpec(memory_space=pltpu.MemorySpace.SMEM),             # noise weights (2,)
        ],
        out_specs=pl.BlockSpec((1, H, W * C2), lambda b: (b, 0, 0)),
        scratch_shapes=[
            pltpu.VMEM((H + 2, (W + 2) * C1), jnp.float32),                # padded stage-1 act
            pltpu.VMEM((H + 2, (W + 2) * C2), jnp.float32),                # padded stage-2 act
        ],
    )
    return pl.pallas_call(
        kernel,
        out_shape=jax.ShapeDtypeStruct((B, H, W * C2), jnp.float32),
        grid_spec=grid_spec,
        compiler_params=pltpu.CompilerParams(
            dimension_semantics=("parallel",)),
    )(x_dense, mod1_t, mod2_t, prep["w1_bd"], prep["b1_d"], prep["w2_bd"],
      prep["b2_d"], n1_dense, n2_dense, prep["nw"])


# ---------------------------------------------------------------------------
# One-time parameter repacking (hoisted out of the forward pass):
#   OIHW conv weights -> block-diagonal HWIO with conv_scale folded in, bf16;
#   conv bias * conv_scale, tiled to the dense lane layout;
#   EqualLinear weight pre-scaled (1/sqrt(style_dim)) and transposed.
# ---------------------------------------------------------------------------
def _block_diag_weight(w_oihw, W, scale):
    C2, C1 = w_oihw.shape[0], w_oihw.shape[1]
    w_hwio = jnp.transpose(w_oihw, (2, 3, 1, 0)) * scale      # (3,3,C1,C2), scale folded
    eye = jnp.eye(W, dtype=w_hwio.dtype)
    wbd = jnp.einsum("yxio,wv->yxwivo", w_hwio, eye)          # (3,3,W,C1,W,C2)
    return wbd.reshape(3, 3, W * C1, W * C2)


def prepare_params(p, W, lr_multiplier=1.0):
    C1, S = p["mod1_w"].shape
    C2 = p["mod2_w"].shape[0]
    eq = 1.0 / math.sqrt(S) * lr_multiplier
    s1 = 1.0 / math.sqrt(C1 * 3 ** 2)
    s2 = 1.0 / math.sqrt(C2 * 3 ** 2)
    return {
        "m1w_t": (p["mod1_w"] * eq).T,                         # (S, C1)
        "m1b": (p["mod1_b"] * lr_multiplier)[None, :],         # (1, C1)
        "m2w_t": (p["mod2_w"] * eq).T,                         # (S, C2)
        "m2b": (p["mod2_b"] * lr_multiplier)[None, :],         # (1, C2)
        "w1_bd": _block_diag_weight(p["conv1_w"], W, s1).astype(jnp.bfloat16),
        "b1_d": jnp.tile(p["conv1_b"] * s1, W)[None, :],       # (1, W*C2)
        "w2_bd": _block_diag_weight(p["conv2_w"], W, s2).astype(jnp.bfloat16),
        "b2_d": jnp.tile(p["conv2_b"] * s2, W)[None, :],       # (1, W*C2)
        "nw": jnp.concatenate([p["noise1_w"], p["noise2_w"]]).astype(jnp.float32),  # (2,)
    }


# ---------------------------------------------------------------------------
# Full StyledConvBlock forward (upsample=False): one fused Pallas call.
# Wrapper ops are layout plumbing + the tiny EqualLinear matmuls (plain JAX).
# ---------------------------------------------------------------------------
def styled_conv_block(x_nchw, style, noise1_nchw, noise2_nchw, prep):
    B, C1, H, W = x_nchw.shape
    C2 = prep["b1_d"].shape[-1] // W

    # NCHW -> channels-interleaved dense layout (B, H, W*C1)
    x_dense = jnp.transpose(x_nchw, (0, 2, 3, 1)).reshape(B, H, W * C1)

    # EqualLinear modulation (scale already folded into prepped weights)
    mod1 = style @ prep["m1w_t"] + prep["m1b"]                 # (B, C1)
    mod2 = style @ prep["m2w_t"] + prep["m2b"]                 # (B, C2)
    mod1_t = jnp.tile(mod1, (1, W))[:, None, :]                # (B, 1, W*C1)
    mod2_t = jnp.tile(mod2, (1, W))[:, None, :]                # (B, 1, W*C2)

    # Pre-broadcast noise over channels into the dense lane layout
    n1_dense = jnp.broadcast_to(noise1_nchw.reshape(B, H, W, 1),
                                (B, H, W, C2)).reshape(B, H, W * C2)
    n2_dense = jnp.broadcast_to(noise2_nchw.reshape(B, H, W, 1),
                                (B, H, W, C2)).reshape(B, H, W * C2)

    out = _styled_block_call(x_dense, mod1_t, mod2_t, n1_dense, n2_dense, prep,
                             H, W, C1, C2)
    return jnp.transpose(out.reshape(B, H, W, C2), (0, 3, 1, 2))   # -> NCHW


# ---------------------------------------------------------------------------
# Deterministic parameter init (same shapes as the PyTorch module).
# PyTorch inits EqualLinear.bias / NoiseInjection.weight to zeros; use small
# deterministic random values so those code paths are numerically exercised.
# ---------------------------------------------------------------------------
def init_params(key, in_channels, out_channels, style_dim):
    ks = jax.random.split(key, 10)
    p = {}
    p["mod1_w"] = jax.random.normal(ks[0], (in_channels, style_dim), jnp.float32)
    p["mod1_b"] = jax.random.normal(ks[1], (in_channels,), jnp.float32) * 0.1
    p["conv1_w"] = jax.random.normal(ks[2], (out_channels, in_channels, 3, 3), jnp.float32) * 0.1
    p["conv1_b"] = jax.random.normal(ks[3], (out_channels,), jnp.float32) * 0.1
    p["noise1_w"] = jax.random.normal(ks[4], (1,), jnp.float32) * 0.1
    p["mod2_w"] = jax.random.normal(ks[5], (out_channels, style_dim), jnp.float32)
    p["mod2_b"] = jax.random.normal(ks[6], (out_channels,), jnp.float32) * 0.1
    p["conv2_w"] = jax.random.normal(ks[7], (out_channels, out_channels, 3, 3), jnp.float32) * 0.1
    p["conv2_b"] = jax.random.normal(ks[8], (out_channels,), jnp.float32) * 0.1
    p["noise2_w"] = jax.random.normal(ks[9], (1,), jnp.float32) * 0.1
    return p


# ---------------------------------------------------------------------------
# Pure-JAX f32 reference reproducing the PyTorch math exactly (for verification).
# ---------------------------------------------------------------------------
def ref_styled_conv_block(x, style, n1, n2, p, in_channels, out_channels):
    def equal_linear_ref(s, w, b, lr=1.0):
        scale = 1.0 / math.sqrt(w.shape[1]) * lr
        return s @ (w * scale).T + b * lr

    def styled_conv_ref(xi, st_in, mw, mb, cw, cb, cin):
        st = equal_linear_ref(st_in, mw, mb)
        xm = xi * st[:, :, None, None]
        out = lax.conv_general_dilated(
            xm, cw, window_strides=(1, 1), padding=((1, 1), (1, 1)),
            dimension_numbers=("NCHW", "OIHW", "NCHW"))
        out = out + cb[None, :, None, None]
        return out * (1.0 / math.sqrt(cin * 3 ** 2))

    leaky = lambda z: jnp.where(z >= 0, z, 0.2 * z)
    o = styled_conv_ref(x, style, p["mod1_w"], p["mod1_b"], p["conv1_w"], p["conv1_b"], in_channels)
    o = leaky(o + p["noise1_w"] * n1)
    o = styled_conv_ref(o, style, p["mod2_w"], p["mod2_b"], p["conv2_w"], p["conv2_b"], out_channels)
    o = leaky(o + p["noise2_w"] * n2)
    return o


if __name__ == "__main__":
    B, Cin, Cout, H, W, style_dim = 2, 4, 8, 16, 16, 32
    key = jax.random.PRNGKey(0)
    kx, ks, kn1, kn2, kp = jax.random.split(key, 5)

    x = jax.random.normal(kx, (B, Cin, H, W), jnp.float32)          # NCHW like PyTorch
    style = jax.random.normal(ks, (B, style_dim), jnp.float32)
    noise1 = jax.random.normal(kn1, (B, 1, H, W), jnp.float32)      # explicit noise[0]
    noise2 = jax.random.normal(kn2, (B, 1, H, W), jnp.float32)      # explicit noise[1]
    params = init_params(kp, Cin, Cout, style_dim)

    prep = prepare_params(params, W)                                # one-time weight repack
    fwd = jax.jit(styled_conv_block)
    out = jax.block_until_ready(fwd(x, style, noise1, noise2, prep))

    ref = ref_styled_conv_block(x, style, noise1, noise2, params, Cin, Cout)
    assert out.shape == (B, Cout, H, W), out.shape
    max_err = float(jnp.max(jnp.abs(out - ref)))
    # bf16 MXU inputs with f32 accumulation -> loose tolerance vs the pure-f32 reference.
    assert jnp.allclose(out, ref, atol=5e-3, rtol=5e-2), f"max_err={max_err}"

    print("KERNEL_OK")
</pallas_src>

<mosaic_0001>
module attributes {stable_mosaic.version = 11 : i64} {
  func.func @_styled_block_kernel(%arg0: i32, %arg1: memref<1x16x64xf32, #tpu.memory_space<vmem>>, %arg2: memref<1x1x64xf32, #tpu.memory_space<vmem>>, %arg3: memref<1x1x128xf32, #tpu.memory_space<vmem>>, %arg4: memref<3x3x64x128xbf16, #tpu.memory_space<vmem>>, %arg5: memref<1x128xf32, #tpu.memory_space<vmem>>, %arg6: memref<3x3x128x128xbf16, #tpu.memory_space<vmem>>, %arg7: memref<1x128xf32, #tpu.memory_space<vmem>>, %arg8: memref<1x16x128xf32, #tpu.memory_space<vmem>>, %arg9: memref<1x16x128xf32, #tpu.memory_space<vmem>>, %arg10: memref<2xf32, #tpu.memory_space<smem>>, %arg11: memref<1x16x128xf32, #tpu.memory_space<vmem>>, %arg12: memref<18x72xf32, #tpu.memory_space<vmem>>, %arg13: memref<18x144xf32, #tpu.memory_space<vmem>>) attributes {dimension_semantics = [#tpu.dimension_semantics<parallel>], iteration_bounds = array<i64: 2>, scalar_prefetch = 0 : i64, scratch_operands = 2 : i64, tpu.core_type = #tpu.core_type<tc>, window_params = [{transform_indices = @transform_0, window_bounds = array<i64: 1, 16, 64>}, {transform_indices = @transform_1, window_bounds = array<i64: 1, 1, 64>}, {transform_indices = @transform_2, window_bounds = array<i64: 1, 1, 128>}, {pipeline_mode = #tpu.pipeline_mode<synchronous>, transform_indices = @transform_3, window_bounds = array<i64: 3, 3, 64, 128>}, {pipeline_mode = #tpu.pipeline_mode<synchronous>, transform_indices = @transform_4, window_bounds = array<i64: 1, 128>}, {pipeline_mode = #tpu.pipeline_mode<synchronous>, transform_indices = @transform_5, window_bounds = array<i64: 3, 3, 128, 128>}, {pipeline_mode = #tpu.pipeline_mode<synchronous>, transform_indices = @transform_6, window_bounds = array<i64: 1, 128>}, {transform_indices = @transform_7, window_bounds = array<i64: 1, 16, 128>}, {transform_indices = @transform_8, window_bounds = array<i64: 1, 16, 128>}, {transform_indices = @transform_9, window_bounds = array<i64: 2>}, {transform_indices = @transform_10, window_bounds = array<i64: 1, 16, 128>}]} {
    %c0 = arith.constant 0 : index
    %c0_0 = arith.constant 0 : index
    %c0_1 = arith.constant 0 : index
    %0 = vector.load %arg1[%c0, %c0_0, %c0_1] : memref<1x16x64xf32, #tpu.memory_space<vmem>>, vector<1x16x64xf32>
    %1 = vector.shape_cast %0 : vector<1x16x64xf32> to vector<16x64xf32>
    %c0_2 = arith.constant 0 : index
    %c0_3 = arith.constant 0 : index
    %c0_4 = arith.constant 0 : index
    %2 = vector.load %arg2[%c0_2, %c0_3, %c0_4] : memref<1x1x64xf32, #tpu.memory_space<vmem>>, vector<1x1x64xf32>
    %3 = vector.shape_cast %2 : vector<1x1x64xf32> to vector<1x64xf32>
    %4 = vector.broadcast %3 : vector<1x64xf32> to vector<16x64xf32>
    %5 = arith.mulf %1, %4 : vector<16x64xf32>
    %cst = arith.constant 0.000000e+00 : f32
    %6 = vector.broadcast %cst : f32 to vector<18x72xf32>
    %c0_5 = arith.constant 0 : index
    %c0_6 = arith.constant 0 : index
    %7 = vector.load %arg12[%c0_5, %c0_6] : memref<18x72xf32, #tpu.memory_space<vmem>>, vector<18x72xf32>
    tpu.vector_store %arg12[%c0_5, %c0_6], %6 {strides = array<i32>} : memref<18x72xf32, #tpu.memory_space<vmem>>, vector<18x72xf32>,
    %c1 = arith.constant 1 : index
    %c4 = arith.constant 4 : index
    %8 = vector.load %arg12[%c1, %c4] : memref<18x72xf32, #tpu.memory_space<vmem>>, vector<16x64xf32>
    tpu.vector_store %arg12[%c1, %c4], %5 {strides = array<i32>} : memref<18x72xf32, #tpu.memory_space<vmem>>, vector<16x64xf32>,
    %cst_7 = arith.constant 0.000000e+00 : f32
    %9 = vector.broadcast %cst_7 : f32 to vector<16x128xf32>
    %c0_8 = arith.constant 0 : index
    %c0_9 = arith.constant 0 : index
    %10 = vector.load %arg12[%c0_8, %c0_9] : memref<18x72xf32, #tpu.memory_space<vmem>>, vector<18x64xf32>
    %11 = vector.extract_strided_slice %10 {offsets = [0, 0], sizes = [16, 64], strides = [1, 1]} : vector<18x64xf32> to vector<16x64xf32>
    %12 = arith.truncf %11 : vector<16x64xf32> to vector<16x64xbf16>
    %c0_10 = arith.constant 0 : index
    %c0_11 = arith.constant 0 : index
    %c0_12 = arith.constant 0 : index
    %c0_13 = arith.constant 0 : index
    %13 = vector.load %arg4[%c0_10, %c0_11, %c0_12, %c0_13] : memref<3x3x64x128xbf16, #tpu.memory_space<vmem>>, vector<1x1x64x128xbf16>
    %14 = vector.shape_cast %13 : vector<1x1x64x128xbf16> to vector<64x128xbf16>
    %cst_14 = arith.constant dense<0.000000e+00> : vector<16x128xf32>
    %15 = tpu.matmul %12, %14, %cst_14 {dimension_numbers = #tpu.dot_dimension_numbers<[1], [0], [0], [1], [0, 0, 1, 1], [], []>} : vector<16x64xbf16>, vector<64x128xbf16>, vector<16x128xf32> -> vector<16x128xf32>
    %16 = arith.addf %9, %15 : vector<16x128xf32>
    %17 = vector.extract_strided_slice %10 {offsets = [1, 0], sizes = [16, 64], strides = [1, 1]} : vector<18x64xf32> to vector<16x64xf32>
    %18 = arith.truncf %17 : vector<16x64xf32> to vector<16x64xbf16>
    %c1_15 = arith.constant 1 : index
    %c0_16 = arith.constant 0 : index
    %c0_17 = arith.constant 0 : index
    %c0_18 = arith.constant 0 : index
    %19 = vector.load %arg4[%c1_15, %c0_16, %c0_17, %c0_18] : memref<3x3x64x128xbf16, #tpu.memory_space<vmem>>, vector<1x1x64x128xbf16>
    %20 = vector.shape_cast %19 : vector<1x1x64x128xbf16> to vector<64x128xbf16>
    %cst_19 = arith.constant dense<0.000000e+00> : vector<16x128xf32>
    %21 = tpu.matmul %18, %20, %cst_19 {dimension_numbers = #tpu.dot_dimension_numbers<[1], [0], [0], [1], [0, 0, 1, 1], [], []>} : vector<16x64xbf16>, vector<64x128xbf16>, vector<16x128xf32> -> vector<16x128xf32>
    %22 = arith.addf %16, %21 : vector<16x128xf32>
    %23 = vector.extract_strided_slice %10 {offsets = [2, 0], sizes = [16, 64], strides = [1, 1]} : vector<18x64xf32> to vector<16x64xf32>
    %24 = arith.truncf %23 : vector<16x64xf32> to vector<16x64xbf16>
    %c2 = arith.constant 2 : index
    %c0_20 = arith.constant 0 : index
    %c0_21 = arith.constant 0 : index
    %c0_22 = arith.constant 0 : index
    %25 = vector.load %arg4[%c2, %c0_20, %c0_21, %c0_22] : memref<3x3x64x128xbf16, #tpu.memory_space<vmem>>, vector<1x1x64x128xbf16>
    %26 = vector.shape_cast %25 : vector<1x1x64x128xbf16> to vector<64x128xbf16>
    %cst_23 = arith.constant dense<0.000000e+00> : vector<16x128xf32>
    %27 = tpu.matmul %24, %26, %cst_23 {dimension_numbers = #tpu.dot_dimension_numbers<[1], [0], [0], [1], [0, 0, 1, 1], [], []>} : vector<16x64xbf16>, vector<64x128xbf16>, vector<16x128xf32> -> vector<16x128xf32>
    %28 = arith.addf %22, %27 : vector<16x128xf32>
    %c0_24 = arith.constant 0 : index
    %c4_25 = arith.constant 4 : index
    %29 = vector.load %arg12[%c0_24, %c4_25] : memref<18x72xf32, #tpu.memory_space<vmem>>, vector<18x64xf32>
    %30 = vector.extract_strided_slice %29 {offsets = [0, 0], sizes = [16, 64], strides = [1, 1]} : vector<18x64xf32> to vector<16x64xf32>
    %31 = arith.truncf %30 : vector<16x64xf32> to vector<16x64xbf16>
    %c0_26 = arith.constant 0 : index
    %c1_27 = arith.constant 1 : index
    %c0_28 = arith.constant 0 : index
    %c0_29 = arith.constant 0 : index
    %32 = vector.load %arg4[%c0_26, %c1_27, %c0_28, %c0_29] : memref<3x3x64x128xbf16, #tpu.memory_space<vmem>>, vector<1x1x64x128xbf16>
    %33 = vector.shape_cast %32 : vector<1x1x64x128xbf16> to vector<64x128xbf16>
    %cst_30 = arith.constant dense<0.000000e+00> : vector<16x128xf32>
    %34 = tpu.matmul %31, %33, %cst_30 {dimension_numbers = #tpu.dot_dimension_numbers<[1], [0], [0], [1], [0, 0, 1, 1], [], []>} : vector<16x64xbf16>, vector<64x128xbf16>, vector<16x128xf32> -> vector<16x128xf32>
    %35 = arith.addf %28, %34 : vector<16x128xf32>
    %36 = vector.extract_strided_slice %29 {offsets = [1, 0], sizes = [16, 64], strides = [1, 1]} : vector<18x64xf32> to vector<16x64xf32>
    %37 = arith.truncf %36 : vector<16x64xf32> to vector<16x64xbf16>
    %c1_31 = arith.constant 1 : index
    %c1_32 = arith.constant 1 : index
    %c0_33 = arith.constant 0 : index
    %c0_34 = arith.constant 0 : index
    %38 = vector.load %arg4[%c1_31, %c1_32, %c0_33, %c0_34] : memref<3x3x64x128xbf16, #tpu.memory_space<vmem>>, vector<1x1x64x128xbf16>
    %39 = vector.shape_cast %38 : vector<1x1x64x128xbf16> to vector<64x128xbf16>
    %cst_35 = arith.constant dense<0.000000e+00> : vector<16x128xf32>
    %40 = tpu.matmul %37, %39, %cst_35 {dimension_numbers = #tpu.dot_dimension_numbers<[1], [0], [0], [1], [0, 0, 1, 1], [], []>} : vector<16x64xbf16>, vector<64x128xbf16>, vector<16x128xf32> -> vector<16x128xf32>
    %41 = arith.addf %35, %40 : vector<16x128xf32>
    %42 = vector.extract_strided_slice %29 {offsets = [2, 0], sizes = [16, 64], strides = [1, 1]} : vector<18x64xf32> to vector<16x64xf32>
    %43 = arith.truncf %42 : vector<16x64xf32> to vector<16x64xbf16>
    %c2_36 = arith.constant 2 : index
    %c1_37 = arith.constant 1 : index
    %c0_38 = arith.constant 0 : index
    %c0_39 = arith.constant 0 : index
    %44 = vector.load %arg4[%c2_36, %c1_37, %c0_38, %c0_39] : memref<3x3x64x128xbf16, #tpu.memory_space<vmem>>, vector<1x1x64x128xbf16>
    %45 = vector.shape_cast %44 : vector<1x1x64x128xbf16> to vector<64x128xbf16>
    %cst_40 = arith.constant dense<0.000000e+00> : vector<16x128xf32>
    %46 = tpu.matmul %43, %45, %cst_40 {dimension_numbers = #tpu.dot_dimension_numbers<[1], [0], [0], [1], [0, 0, 1, 1], [], []>} : vector<16x64xbf16>, vector<64x128xbf16>, vector<16x128xf32> -> vector<16x128xf32>
    %47 = arith.addf %41, %46 : vector<16x128xf32>
    %c0_41 = arith.constant 0 : index
    %c8 = arith.constant 8 : index
    %48 = vector.load %arg12[%c0_41, %c8] : memref<18x72xf32, #tpu.memory_space<vmem>>, vector<18x64xf32>
    %49 = vector.extract_strided_slice %48 {offsets = [0, 0], sizes = [16, 64], strides = [1, 1]} : vector<18x64xf32> to vector<16x64xf32>
    %50 = arith.truncf %49 : vector<16x64xf32> to vector<16x64xbf16>
    %c0_42 = arith.constant 0 : index
    %c2_43 = arith.constant 2 : index
    %c0_44 = arith.constant 0 : index
    %c0_45 = arith.constant 0 : index
    %51 = vector.load %arg4[%c0_42, %c2_43, %c0_44, %c0_45] : memref<3x3x64x128xbf16, #tpu.memory_space<vmem>>, vector<1x1x64x128xbf16>
    %52 = vector.shape_cast %51 : vector<1x1x64x128xbf16> to vector<64x128xbf16>
    %cst_46 = arith.constant dense<0.000000e+00> : vector<16x128xf32>
    %53 = tpu.matmul %50, %52, %cst_46 {dimension_numbers = #tpu.dot_dimension_numbers<[1], [0], [0], [1], [0, 0, 1, 1], [], []>} : vector<16x64xbf16>, vector<64x128xbf16>, vector<16x128xf32> -> vector<16x128xf32>
    %54 = arith.addf %47, %53 : vector<16x128xf32>
    %55 = vector.extract_strided_slice %48 {offsets = [1, 0], sizes = [16, 64], strides = [1, 1]} : vector<18x64xf32> to vector<16x64xf32>
    %56 = arith.truncf %55 : vector<16x64xf32> to vector<16x64xbf16>
    %c1_47 = arith.constant 1 : index
    %c2_48 = arith.constant 2 : index
    %c0_49 = arith.constant 0 : index
    %c0_50 = arith.constant 0 : index
    %57 = vector.load %arg4[%c1_47, %c2_48, %c0_49, %c0_50] : memref<3x3x64x128xbf16, #tpu.memory_space<vmem>>, vector<1x1x64x128xbf16>
    %58 = vector.shape_cast %57 : vector<1x1x64x128xbf16> to vector<64x128xbf16>
    %cst_51 = arith.constant dense<0.000000e+00> : vector<16x128xf32>
    %59 = tpu.matmul %56, %58, %cst_51 {dimension_numbers = #tpu.dot_dimension_numbers<[1], [0], [0], [1], [0, 0, 1, 1], [], []>} : vector<16x64xbf16>, vector<64x128xbf16>, vector<16x128xf32> -> vector<16x128xf32>
    %60 = arith.addf %54, %59 : vector<16x128xf32>
    %61 = vector.extract_strided_slice %48 {offsets = [2, 0], sizes = [16, 64], strides = [1, 1]} : vector<18x64xf32> to vector<16x64xf32>
    %62 = arith.truncf %61 : vector<16x64xf32> to vector<16x64xbf16>
    %c2_52 = arith.constant 2 : index
    %c2_53 = arith.constant 2 : index
    %c0_54 = arith.constant 0 : index
    %c0_55 = arith.constant 0 : index
    %63 = vector.load %arg4[%c2_52, %c2_53, %c0_54, %c0_55] : memref<3x3x64x128xbf16, #tpu.memory_space<vmem>>, vector<1x1x64x128xbf16>
    %64 = vector.shape_cast %63 : vector<1x1x64x128xbf16> to vector<64x128xbf16>
    %cst_56 = arith.constant dense<0.000000e+00> : vector<16x128xf32>
    %65 = tpu.matmul %62, %64, %cst_56 {dimension_numbers = #tpu.dot_dimension_numbers<[1], [0], [0], [1], [0, 0, 1, 1], [], []>} : vector<16x64xbf16>, vector<64x128xbf16>, vector<16x128xf32> -> vector<16x128xf32>
    %66 = arith.addf %60, %65 : vector<16x128xf32>
    %c0_57 = arith.constant 0 : index
    %c0_58 = arith.constant 0 : index
    %67 = vector.load %arg5[%c0_57, %c0_58] : memref<1x128xf32, #tpu.memory_space<vmem>>, vector<1x128xf32>
    %68 = vector.broadcast %67 : vector<1x128xf32> to vector<16x128xf32>
    %69 = arith.addf %66, %68 : vector<16x128xf32>
    %c0_59 = arith.constant 0 : index
    %70 = memref.load %arg10[%c0_59] : memref<2xf32, #tpu.memory_space<smem>>
    %c0_60 = arith.constant 0 : index
    %c0_61 = arith.constant 0 : index
    %c0_62 = arith.constant 0 : index
    %71 = vector.load %arg8[%c0_60, %c0_61, %c0_62] : memref<1x16x128xf32, #tpu.memory_space<vmem>>, vector<1x16x128xf32>
    %72 = vector.shape_cast %71 : vector<1x16x128xf32> to vector<16x128xf32>
    %73 = vector.broadcast %70 : f32 to vector<16x128xf32>
    %74 = arith.mulf %73, %72 : vector<16x128xf32>
    %75 = arith.addf %69, %74 : vector<16x128xf32>
    %cst_63 = arith.constant 0.000000e+00 : f32
    %76 = vector.broadcast %cst_63 : f32 to vector<16x128xf32>
    %77 = arith.cmpf oge, %75, %76 : vector<16x128xf32>
    %cst_64 = arith.constant 2.000000e-01 : f32
    %78 = vector.broadcast %cst_64 : f32 to vector<16x128xf32>
    %79 = arith.mulf %78, %75 : vector<16x128xf32>
    %80 = arith.select %77, %75, %79 : vector<16x128xi1>, vector<16x128xf32>
    %c0_65 = arith.constant 0 : index
    %c0_66 = arith.constant 0 : index
    %c0_67 = arith.constant 0 : index
    %81 = vector.load %arg3[%c0_65, %c0_66, %c0_67] : memref<1x1x128xf32, #tpu.memory_space<vmem>>, vector<1x1x128xf32>
    %82 = vector.shape_cast %81 : vector<1x1x128xf32> to vector<1x128xf32>
    %83 = vector.broadcast %82 : vector<1x128xf32> to vector<16x128xf32>
    %84 = arith.mulf %80, %83 : vector<16x128xf32>
    %cst_68 = arith.constant 0.000000e+00 : f32
    %85 = vector.broadcast %cst_68 : f32 to vector<18x144xf32>
    %c0_69 = arith.constant 0 : index
    %c0_70 = arith.constant 0 : index
    %86 = vector.load %arg13[%c0_69, %c0_70] : memref<18x144xf32, #tpu.memory_space<vmem>>, vector<18x144xf32>
    tpu.vector_store %arg13[%c0_69, %c0_70], %85 {strides = array<i32>} : memref<18x144xf32, #tpu.memory_space<vmem>>, vector<18x144xf32>,
    %c1_71 = arith.constant 1 : index
    %c8_72 = arith.constant 8 : index
    %87 = vector.load %arg13[%c1_71, %c8_72] : memref<18x144xf32, #tpu.memory_space<vmem>>, vector<16x128xf32>
    tpu.vector_store %arg13[%c1_71, %c8_72], %84 {strides = array<i32>} : memref<18x144xf32, #tpu.memory_space<vmem>>, vector<16x128xf32>,
    %cst_73 = arith.constant 0.000000e+00 : f32
    %88 = vector.broadcast %cst_73 : f32 to vector<16x128xf32>
    %c0_74 = arith.constant 0 : index
    %c0_75 = arith.constant 0 : index
    %89 = vector.load %arg13[%c0_74, %c0_75] : memref<18x144xf32, #tpu.memory_space<vmem>>, vector<18x128xf32>
    %90 = vector.extract_strided_slice %89 {offsets = [0, 0], sizes = [16, 128], strides = [1, 1]} : vector<18x128xf32> to vector<16x128xf32>
    %91 = arith.truncf %90 : vector<16x128xf32> to vector<16x128xbf16>
    %c0_76 = arith.constant 0 : index
    %c0_77 = arith.constant 0 : index
    %c0_78 = arith.constant 0 : index
    %c0_79 = arith.constant 0 : index
    %92 = vector.load %arg6[%c0_76, %c0_77, %c0_78, %c0_79] : memref<3x3x128x128xbf16, #tpu.memory_space<vmem>>, vector<1x1x128x128xbf16>
    %93 = vector.shape_cast %92 : vector<1x1x128x128xbf16> to vector<128x128xbf16>
    %cst_80 = arith.constant dense<0.000000e+00> : vector<16x128xf32>
    %94 = tpu.matmul %91, %93, %cst_80 {dimension_numbers = #tpu.dot_dimension_numbers<[1], [0], [0], [1], [0, 0, 1, 1], [], []>} : vector<16x128xbf16>, vector<128x128xbf16>, vector<16x128xf32> -> vector<16x128xf32>
    %95 = arith.addf %88, %94 : vector<16x128xf32>
    %96 = vector.extract_strided_slice %89 {offsets = [1, 0], sizes = [16, 128], strides = [1, 1]} : vector<18x128xf32> to vector<16x128xf32>
    %97 = arith.truncf %96 : vector<16x128xf32> to vector<16x128xbf16>
    %c1_81 = arith.constant 1 : index
    %c0_82 = arith.constant 0 : index
    %c0_83 = arith.constant 0 : index
    %c0_84 = arith.constant 0 : index
    %98 = vector.load %arg6[%c1_81, %c0_82, %c0_83, %c0_84] : memref<3x3x128x128xbf16, #tpu.memory_space<vmem>>, vector<1x1x128x128xbf16>
    %99 = vector.shape_cast %98 : vector<1x1x128x128xbf16> to vector<128x128xbf16>
    %cst_85 = arith.constant dense<0.000000e+00> : vector<16x128xf32>
    %100 = tpu.matmul %97, %99, %cst_85 {dimension_numbers = #tpu.dot_dimension_numbers<[1], [0], [0], [1], [0, 0, 1, 1], [], []>} : vector<16x128xbf16>, vector<128x128xbf16>, vector<16x128xf32> -> vector<16x128xf32>
    %101 = arith.addf %95, %100 : vector<16x128xf32>
    %102 = vector.extract_strided_slice %89 {offsets = [2, 0], sizes = [16, 128], strides = [1, 1]} : vector<18x128xf32> to vector<16x128xf32>
    %103 = arith.truncf %102 : vector<16x128xf32> to vector<16x128xbf16>
    %c2_86 = arith.constant 2 : index
    %c0_87 = arith.constant 0 : index
    %c0_88 = arith.constant 0 : index
    %c0_89 = arith.constant 0 : index
    %104 = vector.load %arg6[%c2_86, %c0_87, %c0_88, %c0_89] : memref<3x3x128x128xbf16, #tpu.memory_space<vmem>>, vector<1x1x128x128xbf16>
    %105 = vector.shape_cast %104 : vector<1x1x128x128xbf16> to vector<128x128xbf16>
    %cst_90 = arith.constant dense<0.000000e+00> : vector<16x128xf32>
    %106 = tpu.matmul %103, %105, %cst_90 {dimension_numbers = #tpu.dot_dimension_numbers<[1], [0], [0], [1], [0, 0, 1, 1], [], []>} : vector<16x128xbf16>, vector<128x128xbf16>, vector<16x128xf32> -> vector<16x128xf32>
    %107 = arith.addf %101, %106 : vector<16x128xf32>
    %c0_91 = arith.constant 0 : index
    %c8_92 = arith.constant 8 : index
    %108 = vector.load %arg13[%c0_91, %c8_92] : memref<18x144xf32, #tpu.memory_space<vmem>>, vector<18x128xf32>
    %109 = vector.extract_strided_slice %108 {offsets = [0, 0], sizes = [16, 128], strides = [1, 1]} : vector<18x128xf32> to vector<16x128xf32>
    %110 = arith.truncf %109 : vector<16x128xf32> to vector<16x128xbf16>
    %c0_93 = arith.constant 0 : index
    %c1_94 = arith.constant 1 : index
    %c0_95 = arith.constant 0 : index
    %c0_96 = arith.constant 0 : index
    %111 = vector.load %arg6[%c0_93, %c1_94, %c0_95, %c0_96] : memref<3x3x128x128xbf16, #tpu.memory_space<vmem>>, vector<1x1x128x128xbf16>
    %112 = vector.shape_cast %111 : vector<1x1x128x128xbf16> to vector<128x128xbf16>
    %cst_97 = arith.constant dense<0.000000e+00> : vector<16x128xf32>
    %113 = tpu.matmul %110, %112, %cst_97 {dimension_numbers = #tpu.dot_dimension_numbers<[1], [0], [0], [1], [0, 0, 1, 1], [], []>} : vector<16x128xbf16>, vector<128x128xbf16>, vector<16x128xf32> -> vector<16x128xf32>
    %114 = arith.addf %107, %113 : vector<16x128xf32>
    %115 = vector.extract_strided_slice %108 {offsets = [1, 0], sizes = [16, 128], strides = [1, 1]} : vector<18x128xf32> to vector<16x128xf32>
    %116 = arith.truncf %115 : vector<16x128xf32> to vector<16x128xbf16>
    %c1_98 = arith.constant 1 : index
    %c1_99 = arith.constant 1 : index
    %c0_100 = arith.constant 0 : index
    %c0_101 = arith.constant 0 : index
    %117 = vector.load %arg6[%c1_98, %c1_99, %c0_100, %c0_101] : memref<3x3x128x128xbf16, #tpu.memory_space<vmem>>, vector<1x1x128x128xbf16>
    %118 = vector.shape_cast %117 : vector<1x1x128x128xbf16> to vector<128x128xbf16>
    %cst_102 = arith.constant dense<0.000000e+00> : vector<16x128xf32>
    %119 = tpu.matmul %116, %118, %cst_102 {dimension_numbers = #tpu.dot_dimension_numbers<[1], [0], [0], [1], [0, 0, 1, 1], [], []>} : vector<16x128xbf16>, vector<128x128xbf16>, vector<16x128xf32> -> vector<16x128xf32>
    %120 = arith.addf %114, %119 : vector<16x128xf32>
    %121 = vector.extract_strided_slice %108 {offsets = [2, 0], sizes = [16, 128], strides = [1, 1]} : vector<18x128xf32> to vector<16x128xf32>
    %122 = arith.truncf %121 : vector<16x128xf32> to vector<16x128xbf16>
    %c2_103 = arith.constant 2 : index
    %c1_104 = arith.constant 1 : index
    %c0_105 = arith.constant 0 : index
    %c0_106 = arith.constant 0 : index
    %123 = vector.load %arg6[%c2_103, %c1_104, %c0_105, %c0_106] : memref<3x3x128x128xbf16, #tpu.memory_space<vmem>>, vector<1x1x128x128xbf16>
    %124 = vector.shape_cast %123 : vector<1x1x128x128xbf16> to vector<128x128xbf16>
    %cst_107 = arith.constant dense<0.000000e+00> : vector<16x128xf32>
    %125 = tpu.matmul %122, %124, %cst_107 {dimension_numbers = #tpu.dot_dimension_numbers<[1], [0], [0], [1], [0, 0, 1, 1], [], []>} : vector<16x128xbf16>, vector<128x128xbf16>, vector<16x128xf32> -> vector<16x128xf32>
    %126 = arith.addf %120, %125 : vector<16x128xf32>
    %c0_108 = arith.constant 0 : index
    %c16 = arith.constant 16 : index
    %127 = vector.load %arg13[%c0_108, %c16] : memref<18x144xf32, #tpu.memory_space<vmem>>, vector<18x128xf32>
    %128 = vector.extract_strided_slice %127 {offsets = [0, 0], sizes = [16, 128], strides = [1, 1]} : vector<18x128xf32> to vector<16x128xf32>
    %129 = arith.truncf %128 : vector<16x128xf32> to vector<16x128xbf16>
    %c0_109 = arith.constant 0 : index
    %c2_110 = arith.constant 2 : index
    %c0_111 = arith.constant 0 : index
    %c0_112 = arith.constant 0 : index
    %130 = vector.load %arg6[%c0_109, %c2_110, %c0_111, %c0_112] : memref<3x3x128x128xbf16, #tpu.memory_space<vmem>>, vector<1x1x128x128xbf16>
    %131 = vector.shape_cast %130 : vector<1x1x128x128xbf16> to vector<128x128xbf16>
    %cst_113 = arith.constant dense<0.000000e+00> : vector<16x128xf32>
    %132 = tpu.matmul %129, %131, %cst_113 {dimension_numbers = #tpu.dot_dimension_numbers<[1], [0], [0], [1], [0, 0, 1, 1], [], []>} : vector<16x128xbf16>, vector<128x128xbf16>, vector<16x128xf32> -> vector<16x128xf32>
    %133 = arith.addf %126, %132 : vector<16x128xf32>
    %134 = vector.extract_strided_slice %127 {offsets = [1, 0], sizes = [16, 128], strides = [1, 1]} : vector<18x128xf32> to vector<16x128xf32>
    %135 = arith.truncf %134 : vector<16x128xf32> to vector<16x128xbf16>
    %c1_114 = arith.constant 1 : index
    %c2_115 = arith.constant 2 : index
    %c0_116 = arith.constant 0 : index
    %c0_117 = arith.constant 0 : index
    %136 = vector.load %arg6[%c1_114, %c2_115, %c0_116, %c0_117] : memref<3x3x128x128xbf16, #tpu.memory_space<vmem>>, vector<1x1x128x128xbf16>
    %137 = vector.shape_cast %136 : vector<1x1x128x128xbf16> to vector<128x128xbf16>
    %cst_118 = arith.constant dense<0.000000e+00> : vector<16x128xf32>
    %138 = tpu.matmul %135, %137, %cst_118 {dimension_numbers = #tpu.dot_dimension_numbers<[1], [0], [0], [1], [0, 0, 1, 1], [], []>} : vector<16x128xbf16>, vector<128x128xbf16>, vector<16x128xf32> -> vector<16x128xf32>
    %139 = arith.addf %133, %138 : vector<16x128xf32>
    %140 = vector.extract_strided_slice %127 {offsets = [2, 0], sizes = [16, 128], strides = [1, 1]} : vector<18x128xf32> to vector<16x128xf32>
    %141 = arith.truncf %140 : vector<16x128xf32> to vector<16x128xbf16>
    %c2_119 = arith.constant 2 : index
    %c2_120 = arith.constant 2 : index
    %c0_121 = arith.constant 0 : index
    %c0_122 = arith.constant 0 : index
    %142 = vector.load %arg6[%c2_119, %c2_120, %c0_121, %c0_122] : memref<3x3x128x128xbf16, #tpu.memory_space<vmem>>, vector<1x1x128x128xbf16>
    %143 = vector.shape_cast %142 : vector<1x1x128x128xbf16> to vector<128x128xbf16>
    %cst_123 = arith.constant dense<0.000000e+00> : vector<16x128xf32>
    %144 = tpu.matmul %141, %143, %cst_123 {dimension_numbers = #tpu.dot_dimension_numbers<[1], [0], [0], [1], [0, 0, 1, 1], [], []>} : vector<16x128xbf16>, vector<128x128xbf16>, vector<16x128xf32> -> vector<16x128xf32>
    %145 = arith.addf %139, %144 : vector<16x128xf32>
    %c0_124 = arith.constant 0 : index
    %c0_125 = arith.constant 0 : index
    %146 = vector.load %arg7[%c0_124, %c0_125] : memref<1x128xf32, #tpu.memory_space<vmem>>, vector<1x128xf32>
    %147 = vector.broadcast %146 : vector<1x128xf32> to vector<16x128xf32>
    %148 = arith.addf %145, %147 : vector<16x128xf32>
    %c1_126 = arith.constant 1 : index
    %149 = memref.load %arg10[%c1_126] : memref<2xf32, #tpu.memory_space<smem>>
    %c0_127 = arith.constant 0 : index
    %c0_128 = arith.constant 0 : index
    %c0_129 = arith.constant 0 : index
    %150 = vector.load %arg9[%c0_127, %c0_128, %c0_129] : memref<1x16x128xf32, #tpu.memory_space<vmem>>, vector<1x16x128xf32>
    %151 = vector.shape_cast %150 : vector<1x16x128xf32> to vector<16x128xf32>
    %152 = vector.broadcast %149 : f32 to vector<16x128xf32>
    %153 = arith.mulf %152, %151 : vector<16x128xf32>
    %154 = arith.addf %148, %153 : vector<16x128xf32>
    %cst_130 = arith.constant 0.000000e+00 : f32
    %155 = vector.broadcast %cst_130 : f32 to vector<16x128xf32>
    %156 = arith.cmpf oge, %154, %155 : vector<16x128xf32>
    %cst_131 = arith.constant 2.000000e-01 : f32
    %157 = vector.broadcast %cst_131 : f32 to vector<16x128xf32>
    %158 = arith.mulf %157, %154 : vector<16x128xf32>
    %159 = arith.select %156, %154, %158 : vector<16x128xi1>, vector<16x128xf32>
    %c0_132 = arith.constant 0 : index
    %c0_133 = arith.constant 0 : index
    %c0_134 = arith.constant 0 : index
    %160 = vector.load %arg11[%c0_132, %c0_133, %c0_134] : memref<1x16x128xf32, #tpu.memory_space<vmem>>, vector<1x16x128xf32>
    %161 = vector.shape_cast %160 : vector<1x16x128xf32> to vector<16x128xf32>
    %162 = vector.shape_cast %159 : vector<16x128xf32> to vector<1x16x128xf32>
    tpu.vector_store %arg11[%c0_132, %c0_133, %c0_134], %162 {strides = array<i32>} : memref<1x16x128xf32, #tpu.memory_space<vmem>>, vector<1x16x128xf32>,
    return
  }
  func.func @transform_0(%arg0: i32) -> (i32, i32, i32) {
    %c0_i32 = arith.constant 0 : i32
    %c0_i32_0 = arith.constant 0 : i32
    %c0_i32_1 = arith.constant 0 : i32
    return %arg0, %c0_i32, %c0_i32_0 : i32, i32, i32
  }
  func.func @transform_1(%arg0: i32) -> (i32, i32, i32) {
    %c0_i32 = arith.constant 0 : i32
    %c0_i32_0 = arith.constant 0 : i32
    %c0_i32_1 = arith.constant 0 : i32
    return %arg0, %c0_i32, %c0_i32_0 : i32, i32, i32
  }
  func.func @transform_2(%arg0: i32) -> (i32, i32, i32) {
    %c0_i32 = arith.constant 0 : i32
    %c0_i32_0 = arith.constant 0 : i32
    %c0_i32_1 = arith.constant 0 : i32
    return %arg0, %c0_i32, %c0_i32_0 : i32, i32, i32
  }
  func.func @transform_3(%arg0: i32) -> (i32, i32, i32, i32) {
    %c0_i32 = arith.constant 0 : i32
    %c0_i32_0 = arith.constant 0 : i32
    %c0_i32_1 = arith.constant 0 : i32
    %c0_i32_2 = arith.constant 0 : i32
    %c0_i32_3 = arith.constant 0 : i32
    return %c0_i32, %c0_i32_0, %c0_i32_1, %c0_i32_2 : i32, i32, i32, i32
  }
  func.func @transform_4(%arg0: i32) -> (i32, i32) {
    %c0_i32 = arith.constant 0 : i32
    %c0_i32_0 = arith.constant 0 : i32
    %c0_i32_1 = arith.constant 0 : i32
    return %c0_i32, %c0_i32_0 : i32, i32
  }
  func.func @transform_5(%arg0: i32) -> (i32, i32, i32, i32) {
    %c0_i32 = arith.constant 0 : i32
    %c0_i32_0 = arith.constant 0 : i32
    %c0_i32_1 = arith.constant 0 : i32
    %c0_i32_2 = arith.constant 0 : i32
    %c0_i32_3 = arith.constant 0 : i32
    return %c0_i32, %c0_i32_0, %c0_i32_1, %c0_i32_2 : i32, i32, i32, i32
  }
  func.func @transform_6(%arg0: i32) -> (i32, i32) {
    %c0_i32 = arith.constant 0 : i32
    %c0_i32_0 = arith.constant 0 : i32
    %c0_i32_1 = arith.constant 0 : i32
    return %c0_i32, %c0_i32_0 : i32, i32
  }
  func.func @transform_7(%arg0: i32) -> (i32, i32, i32) {
    %c0_i32 = arith.constant 0 : i32
    %c0_i32_0 = arith.constant 0 : i32
    %c0_i32_1 = arith.constant 0 : i32
    return %arg0, %c0_i32, %c0_i32_0 : i32, i32, i32
  }
  func.func @transform_8(%arg0: i32) -> (i32, i32, i32) {
    %c0_i32 = arith.constant 0 : i32
    %c0_i32_0 = arith.constant 0 : i32
    %c0_i32_1 = arith.constant 0 : i32
    return %arg0, %c0_i32, %c0_i32_0 : i32, i32, i32
  }
  func.func @transform_9(%arg0: i32) -> i32 {
    %c0_i32 = arith.constant 0 : i32
    %c0_i32_0 = arith.constant 0 : i32
    return %c0_i32 : i32
  }
  func.func @transform_10(%arg0: i32) -> (i32, i32, i32) {
    %c0_i32 = arith.constant 0 : i32
    %c0_i32_0 = arith.constant 0 : i32
    %c0_i32_1 = arith.constant 0 : i32
    return %arg0, %c0_i32, %c0_i32_0 : i32, i32, i32
  }
}

</mosaic_0001>

<llo_original>
// kernel: styled_conv_block.1
$region0: #{styled_conv_block.1}
  #allocation0 [shape = 'u32[]', space=smem, size = 0x4, offset = 0x4, fixed_abs, tag = 'smem constant byte address 0x4 - core index']
  #allocation1 [shape = 'u32[144,128]{1,0:T(1,128)}', space=vmem, size = 0x12000, scoped, tag = 'internal scratch']
  #allocation2 [shape = 'f32[18,72]{1,0:T(8,128)}', space=vmem, size = 0x3000, scoped, tag = 'scratch operand']
  #allocation3 [shape = 'f32[18,144]{1,0:T(8,128)}', space=vmem, size = 0x6000, scoped, tag = 'scratch operand']
  %s0 = inlined_call_operand.vmem [shape: f32[2,16,64], index: 0, kind: input, shape index: {}]
  %s1 = inlined_call_operand.vmem [shape: f32[2,1,64], index: 1, kind: input, shape index: {}]
  %s2 = inlined_call_operand.vmem [shape: f32[2,1,128], index: 2, kind: input, shape index: {}]
  %s3 = inlined_call_operand.vmem [shape: bf16[3,3,64,128], index: 3, kind: input, shape index: {}]
  %s4 = inlined_call_operand.vmem [shape: f32[1,128], index: 4, kind: input, shape index: {}]
  %s5 = inlined_call_operand.vmem [shape: bf16[3,3,128,128], index: 5, kind: input, shape index: {}]
  %s6 = inlined_call_operand.vmem [shape: f32[1,128], index: 6, kind: input, shape index: {}]
  %s7 = inlined_call_operand.vmem [shape: f32[2,16,128], index: 7, kind: input, shape index: {}]
  %s8 = inlined_call_operand.vmem [shape: f32[2,16,128], index: 8, kind: input, shape index: {}]
  %s9 = inlined_call_operand.vmem [shape: f32[2], index: 9, kind: input, shape index: {}]
  %s10 = inlined_call_operand.vmem [shape: f32[2,16,128], index: 10, kind: output, shape index: {}]
  %s11 = sld [smem:[#allocation0]]
  $region77: #{styled_conv_block.1} parent=0
    _
  %s13 = ssub.s32 1, %s11
  %s14 = scalar_select 0, %s13, %s11
  $region1: #{styled_conv_block.1} parent=0
    #allocation4 [shape = 'u8[512]{0}', space=smem, size = 0x200, scoped, tag = 'input window, operand 9, single buffered']
    #allocation5 [shape = 's32[2]{0}', space=sflag, size = 0x8, scoped, tag = 'scoped memory for styled_conv_block.1']
    %15 = vsyncpa [#allocation5], 0
    loop: start=0, step=1, limit=4
    $region2: #{styled_conv_block.1} parent=1 // loop_pre_header
      _
    $region3: #{styled_conv_block.1} parent=1 // loop_header
      %s17 = sphi 0, %s21
      %p18 = scmp.ge.s32.totalorder %s17, 4
      %s27 = sphi 0, %s29
      %s30 = sphi 0, %s27
      %s31 = sphi 0, %s30
      %s47 = sphi 0, %s31
      %s53 = sphi 0, %s55
      %s56 = sphi 0, %s53
      %s57 = sphi 0, %s56
      %s73 = sphi 0, %s57
      %s79 = sphi 0, %s81
      %s82 = sphi 0, %s79
      %s83 = sphi 0, %s82
      %s99 = sphi 0, %s83
      %s103 = sphi 0, %s103
      %s105 = sphi 0, %s103
      %s106 = sphi 0, %s105
      %s120 = sphi 0, %s106
      %s124 = sphi 0, %s124
      %s126 = sphi 0, %s124
      %s127 = sphi 0, %s126
      %s141 = sphi 0, %s127
      %s145 = sphi 0, %s145
      %s147 = sphi 0, %s145
      %s148 = sphi 0, %s147
      %s162 = sphi 0, %s148
      %s166 = sphi 0, %s166
      %s168 = sphi 0, %s166
      %s169 = sphi 0, %s168
      %s183 = sphi 0, %s169
      %s189 = sphi 0, %s191
      %s192 = sphi 0, %s189
      %s193 = sphi 0, %s192
      %s209 = sphi 0, %s193
      %s215 = sphi 0, %s217
      %s218 = sphi 0, %s215
      %s219 = sphi 0, %s218
      %s235 = sphi 0, %s219
      %s239 = sphi 0, %s239
      %s241 = sphi 0, %s239
      %s242 = sphi 0, %s241
      %s256 = sphi 0, %s242
      %s262 = sphi 0, %s264
      %s265 = sphi 0, %s262
      %s266 = sphi 0, %s265
      %s282 = sphi 0, %s266
    $region4: #{styled_conv_block.1} parent=1 // loop_header_branch
      %20 = sbr.rel (%p18) target = $region8
    $region5: #{styled_conv_block.1} parent=1 // loop_body
      %s22 = ssub.s32 %s17, 1
      %s23 = ssub.s32 %s17, 2
      %s24 = sadd.s32 %s17, 1
      %s25 = ssub.s32 %s17, %s24
      %p26 = scmp.eq.s32.totalorder %s25, 0
      %s28 = sadd.s32 %s27, 1
      %s29 = scalar_select %p26, %s27, %s28
      %p32 = pneg %p26
      %p33 = scmp.eq.s32.totalorder %s17, 1
      %p34 = por %p32, %p33
      %p35 = scmp.ne.s32.totalorder %s27, %s30
      %p36 = scmp.eq.s32.totalorder %s17, 0
      %p37 = por %p35, %p36
      %p38 = scmp.ne.s32.totalorder %s27, %s30
      %p39 = scmp.eq.s32.totalorder %s22, 1
      %p40 = por %p38, %p39
      %p41 = scmp.ne.s32.totalorder %s30, %s31
      %p42 = scmp.eq.s32.totalorder %s22, 0
      %p43 = por %p41, %p42
      %p44 = scmp.ne.s32.totalorder %s30, %s31
      %p45 = scmp.eq.s32.totalorder %s23, 1
      %p46 = por %p44, %p45
      %p48 = scmp.ne.s32.totalorder %s31, %s47
      %p49 = scmp.eq.s32.totalorder %s23, 0
      %p50 = por %p48, %p49
      %s51 = ssub.s32 %s17, %s24
      %p52 = scmp.eq.s32.totalorder %s51, 0
      %s54 = sadd.s32 %s53, 1
      %s55 = scalar_select %p52, %s53, %s54
      %p58 = pneg %p52
      %p59 = scmp.eq.s32.totalorder %s17, 1
      %p60 = por %p58, %p59
      %p61 = scmp.ne.s32.totalorder %s53, %s56
      %p62 = scmp.eq.s32.totalorder %s17, 0
      %p63 = por %p61, %p62
      %p64 = scmp.ne.s32.totalorder %s53, %s56
      %p65 = scmp.eq.s32.totalorder %s22, 1
      %p66 = por %p64, %p65
      %p67 = scmp.ne.s32.totalorder %s56, %s57
      %p68 = scmp.eq.s32.totalorder %s22, 0
      %p69 = por %p67, %p68
      %p70 = scmp.ne.s32.totalorder %s56, %s57
      %p71 = scmp.eq.s32.totalorder %s23, 1
      %p72 = por %p70, %p71
      %p74 = scmp.ne.s32.totalorder %s57, %s73
      %p75 = scmp.eq.s32.totalorder %s23, 0
      %p76 = por %p74, %p75
      %s77 = ssub.s32 %s17, %s24
      %p78 = scmp.eq.s32.totalorder %s77, 0
      %s80 = sadd.s32 %s79, 1
      %s81 = scalar_select %p78, %s79, %s80
      %p84 = pneg %p78
      %p85 = scmp.eq.s32.totalorder %s17, 1
      %p86 = por %p84, %p85
      %p87 = scmp.ne.s32.totalorder %s79, %s82
      %p88 = scmp.eq.s32.totalorder %s17, 0
      %p89 = por %p87, %p88
      %p90 = scmp.ne.s32.totalorder %s79, %s82
      %p91 = scmp.eq.s32.totalorder %s22, 1
      %p92 = por %p90, %p91
      %p93 = scmp.ne.s32.totalorder %s82, %s83
      %p94 = scmp.eq.s32.totalorder %s22, 0
      %p95 = por %p93, %p94
      %p96 = scmp.ne.s32.totalorder %s82, %s83
      %p97 = scmp.eq.s32.totalorder %s23, 1
      %p98 = por %p96, %p97
      %p100 = scmp.ne.s32.totalorder %s83, %s99
      %p101 = scmp.eq.s32.totalorder %s23, 0
      %p102 = por %p100, %p101
      %s104 = sadd.s32 %s103, 1
      %p107 = scmp.eq.s32.totalorder %s17, 1
      %p108 = scmp.ne.s32.totalorder %s103, %s105
      %p109 = scmp.eq.s32.totalorder %s17, 0
      %p110 = por %p108, %p109
      %p111 = scmp.ne.s32.totalorder %s103, %s105
      %p112 = scmp.eq.s32.totalorder %s22, 1
      %p113 = por %p111, %p112
      %p114 = scmp.ne.s32.totalorder %s105, %s106
      %p115 = scmp.eq.s32.totalorder %s22, 0
      %p116 = por %p114, %p115
      %p117 = scmp.ne.s32.totalorder %s105, %s106
      %p118 = scmp.eq.s32.totalorder %s23, 1
      %p119 = por %p117, %p118
      %p121 = scmp.ne.s32.totalorder %s106, %s120
      %p122 = scmp.eq.s32.totalorder %s23, 0
      %p123 = por %p121, %p122
      %s125 = sadd.s32 %s124, 1
      %p128 = scmp.eq.s32.totalorder %s17, 1
      %p129 = scmp.ne.s32.totalorder %s124, %s126
      %p130 = scmp.eq.s32.totalorder %s17, 0
      %p131 = por %p129, %p130
      %p132 = scmp.ne.s32.totalorder %s124, %s126
      %p133 = scmp.eq.s32.totalorder %s22, 1
      %p134 = por %p132, %p133
      %p135 = scmp.ne.s32.totalorder %s126, %s127
      %p136 = scmp.eq.s32.totalorder %s22, 0
      %p137 = por %p135, %p136
      %p138 = scmp.ne.s32.totalorder %s126, %s127
      %p139 = scmp.eq.s32.totalorder %s23, 1
      %p140 = por %p138, %p139
      %p142 = scmp.ne.s32.totalorder %s127, %s141
      %p143 = scmp.eq.s32.totalorder %s23, 0
      %p144 = por %p142, %p143
      %s146 = sadd.s32 %s145, 1
      %p149 = scmp.eq.s32.totalorder %s17, 1
      %p150 = scmp.ne.s32.totalorder %s145, %s147
      %p151 = scmp.eq.s32.totalorder %s17, 0
      %p152 = por %p150, %p151
      %p153 = scmp.ne.s32.totalorder %s145, %s147
      %p154 = scmp.eq.s32.totalorder %s22, 1
      %p155 = por %p153, %p154
      %p156 = scmp.ne.s32.totalorder %s147, %s148
      %p157 = scmp.eq.s32.totalorder %s22, 0
      %p158 = por %p156, %p157
      %p159 = scmp.ne.s32.totalorder %s147, %s148
      %p160 = scmp.eq.s32.totalorder %s23, 1
      %p161 = por %p159, %p160
      %p163 = scmp.ne.s32.totalorder %s148, %s162
      %p164 = scmp.eq.s32.totalorder %s23, 0
      %p165 = por %p163, %p164
      %s167 = sadd.s32 %s166, 1
      %p170 = scmp.eq.s32.totalorder %s17, 1
      %p171 = scmp.ne.s32.totalorder %s166, %s168
      %p172 = scmp.eq.s32.totalorder %s17, 0
      %p173 = por %p171, %p172
      %p174 = scmp.ne.s32.totalorder %s166, %s168
      %p175 = scmp.eq.s32.totalorder %s22, 1
      %p176 = por %p174, %p175
      %p177 = scmp.ne.s32.totalorder %s168, %s169
      %p178 = scmp.eq.s32.totalorder %s22, 0
      %p179 = por %p177, %p178
      %p180 = scmp.ne.s32.totalorder %s168, %s169
      %p181 = scmp.eq.s32.totalorder %s23, 1
      %p182 = por %p180, %p181
      %p184 = scmp.ne.s32.totalorder %s169, %s183
      %p185 = scmp.eq.s32.totalorder %s23, 0
      %p186 = por %p184, %p185
      %s187 = ssub.s32 %s17, %s24
      %p188 = scmp.eq.s32.totalorder %s187, 0
      %s190 = sadd.s32 %s189, 1
      %s191 = scalar_select %p188, %s189, %s190
      %p194 = pneg %p188
      %p195 = scmp.eq.s32.totalorder %s17, 1
      %p196 = por %p194, %p195
      %p197 = scmp.ne.s32.totalorder %s189, %s192
      %p198 = scmp.eq.s32.totalorder %s17, 0
      %p199 = por %p197, %p198
      %p200 = scmp.ne.s32.totalorder %s189, %s192
      %p201 = scmp.eq.s32.totalorder %s22, 1
      %p202 = por %p200, %p201
      %p203 = scmp.ne.s32.totalorder %s192, %s193
      %p204 = scmp.eq.s32.totalorder %s22, 0
      %p205 = por %p203, %p204
      %p206 = scmp.ne.s32.totalorder %s192, %s193
      %p207 = scmp.eq.s32.totalorder %s23, 1
      %p208 = por %p206, %p207
      %p210 = scmp.ne.s32.totalorder %s193, %s209
      %p211 = scmp.eq.s32.totalorder %s23, 0
      %p212 = por %p210, %p211
      %s213 = ssub.s32 %s17, %s24
      %p214 = scmp.eq.s32.totalorder %s213, 0
      %s216 = sadd.s32 %s215, 1
      %s217 = scalar_select %p214, %s215, %s216
      %p220 = pneg %p214
      %p221 = scmp.eq.s32.totalorder %s17, 1
      %p222 = por %p220, %p221
      %p223 = scmp.ne.s32.totalorder %s215, %s218
      %p224 = scmp.eq.s32.totalorder %s17, 0
      %p225 = por %p223, %p224
      %p226 = scmp.ne.s32.totalorder %s215, %s218
      %p227 = scmp.eq.s32.totalorder %s22, 1
      %p228 = por %p226, %p227
      %p229 = scmp.ne.s32.totalorder %s218, %s219
      %p230 = scmp.eq.s32.totalorder %s22, 0
      %p231 = por %p229, %p230
      %p232 = scmp.ne.s32.totalorder %s218, %s219
      %p233 = scmp.eq.s32.totalorder %s23, 1
      %p234 = por %p232, %p233
      %p236 = scmp.ne.s32.totalorder %s219, %s235
      %p237 = scmp.eq.s32.totalorder %s23, 0
      %p238 = por %p236, %p237
      %s240 = sadd.s32 %s239, 1
      %p243 = scmp.eq.s32.totalorder %s17, 1
      %p244 = scmp.ne.s32.totalorder %s239, %s241
      %p245 = scmp.eq.s32.totalorder %s17, 0
      %p246 = por %p244, %p245
      %p247 = scmp.ne.s32.totalorder %s239, %s241
      %p248 = scmp.eq.s32.totalorder %s22, 1
      %p249 = por %p247, %p248
      %p250 = scmp.ne.s32.totalorder %s241, %s242
      %p251 = scmp.eq.s32.totalorder %s22, 0
      %p252 = por %p250, %p251
      %p253 = scmp.ne.s32.totalorder %s241, %s242
      %p254 = scmp.eq.s32.totalorder %s23, 1
      %p255 = por %p253, %p254
      %p257 = scmp.ne.s32.totalorder %s242, %s256
      %p258 = scmp.eq.s32.totalorder %s23, 0
      %p259 = por %p257, %p258
      %s260 = ssub.s32 %s17, %s24
      %p261 = scmp.eq.s32.totalorder %s260, 0
      %s263 = sadd.s32 %s262, 1
      %s264 = scalar_select %p261, %s262, %s263
      %p267 = pneg %p261
      %p268 = scmp.eq.s32.totalorder %s17, 1
      %p269 = por %p267, %p268
      %p270 = scmp.ne.s32.totalorder %s262, %s265
      %p271 = scmp.eq.s32.totalorder %s17, 0
      %p272 = por %p270, %p271
      %p273 = scmp.ne.s32.totalorder %s262, %s265
      %p274 = scmp.eq.s32.totalorder %s22, 1
      %p275 = por %p273, %p274
      %p276 = scmp.ne.s32.totalorder %s265, %s266
      %p277 = scmp.eq.s32.totalorder %s22, 0
      %p278 = por %p276, %p277
      %p279 = scmp.ne.s32.totalorder %s265, %s266
      %p280 = scmp.eq.s32.totalorder %s23, 1
      %p281 = por %p279, %p280
      %p283 = scmp.ne.s32.totalorder %s266, %s282
      %p284 = scmp.eq.s32.totalorder %s23, 0
      %p285 = por %p283, %p284
      %p286 = scmp.le.s32.totalorder 1, %s17
      %p287 = scmp.lt.s32.totalorder %s17, 3
      %p288 = pnand %p286, %p287
      %p289 = pneg %p288
      // Predicated region
      $region9: #{styled_conv_block.1} parent=5 // pred_check
        _
      $region10: #{styled_conv_block.1} parent=5 // pred_check_branch
        %291 = sbr.rel (%p288) target = $region12
      $region11: #{styled_conv_block.1} parent=5 // pred_region
        %s292 = ssub.s32 %s17, 1
        // Predicated region
        $region13: #{styled_conv_block.1} parent=11 // pred_check
          %p293 = pneg %p116
        $region14: #{styled_conv_block.1} parent=11 // pred_check_branch
          %295 = sbr.rel (%p293) target = $region16
        $region15: #{styled_conv_block.1} parent=11 // pred_region
          _
        $region16: #{styled_conv_block.1} parent=11 // pred_fallthru
          _
        // Predicated region
        $region17: #{styled_conv_block.1} parent=11 // pred_check
          %p296 = pneg %p137
        $region18: #{styled_conv_block.1} parent=11 // pred_check_branch
          %298 = sbr.rel (%p296) target = $region20
        $region19: #{styled_conv_block.1} parent=11 // pred_region
          _
        $region20: #{styled_conv_block.1} parent=11 // pred_fallthru
          _
        // Predicated region
        $region21: #{styled_conv_block.1} parent=11 // pred_check
          %p299 = pneg %p158
        $region22: #{styled_conv_block.1} parent=11 // pred_check_branch
          %301 = sbr.rel (%p299) target = $region24
        $region23: #{styled_conv_block.1} parent=11 // pred_region
          _
        $region24: #{styled_conv_block.1} parent=11 // pred_fallthru
          _
        // Predicated region
        $region25: #{styled_conv_block.1} parent=11 // pred_check
          %p302 = pneg %p179
        $region26: #{styled_conv_block.1} parent=11 // pred_check_branch
          %304 = sbr.rel (%p302) target = $region28
        $region27: #{styled_conv_block.1} parent=11 // pred_region
          _
        $region28: #{styled_conv_block.1} parent=11 // pred_fallthru
          _
        // Predicated region
        $region29: #{styled_conv_block.1} parent=11 // pred_check
          %p305 = pneg %p252
        $region30: #{styled_conv_block.1} parent=11 // pred_check_branch
          %307 = sbr.rel (%p305) target = $region32
        $region31: #{styled_conv_block.1} parent=11 // pred_region
          %s309 = ssub.s32 16, 16
          %310 = vsyncadd [#allocation5], %s309
          %s312 = sshll.u32 %s9, 4
          %s313 = int_to_ptr.vmem [resolvable:$true] %s312
          %315 = dma.vmem_to_smem %s313, 16, [#allocation4], [#allocation5]
        $region32: #{styled_conv_block.1} parent=11 // pred_fallthru
          _
      $region12: #{styled_conv_block.1} parent=5 // pred_fallthru
        _
      %p316 = scmp.lt.s32.totalorder %s17, 2
      // Predicated region
      $region33: #{styled_conv_block.1} parent=5 // pred_check
        %p317 = pneg %p316
      $region34: #{styled_conv_block.1} parent=5 // pred_check_branch
        %319 = sbr.rel (%p317) target = $region36
      $region35: #{styled_conv_block.1} parent=5 // pred_region
        // Predicated region
        $region37: #{styled_conv_block.1} parent=35 // pred_check
          %p320 = pneg %p37
        $region38: #{styled_conv_block.1} parent=35 // pred_check_branch
          %322 = sbr.rel (%p320) target = $region40
        $region39: #{styled_conv_block.1} parent=35 // pred_region
          %p323 = scmp.lt.s32.totalorder %s17, 1
          %s324 = scalar_select %p323, %s17, 1
          %s325 = smul.addr %s324, 2
          %s326 = smul.addr %s325, 8
          %s327 = scalar_lea.vmem %s0, %s326
        $region40: #{styled_conv_block.1} parent=35 // pred_fallthru
          _
        // Predicated region
        $region41: #{styled_conv_block.1} parent=35 // pred_check
          %p328 = pneg %p63
        $region42: #{styled_conv_block.1} parent=35 // pred_check_branch
          %330 = sbr.rel (%p328) target = $region44
        $region43: #{styled_conv_block.1} parent=35 // pred_region
          %p331 = scmp.lt.s32.totalorder %s17, 1
          %s332 = scalar_select %p331, %s17, 1
          %s333 = scalar_lea.vmem %s1, %s332
        $region44: #{styled_conv_block.1} parent=35 // pred_fallthru
          _
        // Predicated region
        $region45: #{styled_conv_block.1} parent=35 // pred_check
          %p334 = pneg %p89
        $region46: #{styled_conv_block.1} parent=35 // pred_check_branch
          %336 = sbr.rel (%p334) target = $region48
        $region47: #{styled_conv_block.1} parent=35 // pred_region
          %p337 = scmp.lt.s32.totalorder %s17, 1
          %s338 = scalar_select %p337, %s17, 1
          %s339 = scalar_lea.vmem %s2, %s338
        $region48: #{styled_conv_block.1} parent=35 // pred_fallthru
          _
        // Predicated region
        $region49: #{styled_conv_block.1} parent=35 // pred_check
          %p340 = pneg %p199
        $region50: #{styled_conv_block.1} parent=35 // pred_check_branch
          %342 = sbr.rel (%p340) target = $region52
        $region51: #{styled_conv_block.1} parent=35 // pred_region
          %p343 = scmp.lt.s32.totalorder %s17, 1
          %s344 = scalar_select %p343, %s17, 1
          %s345 = smul.addr %s344, 2
          %s346 = smul.addr %s345, 8
          %s347 = scalar_lea.vmem %s7, %s346
        $region52: #{styled_conv_block.1} parent=35 // pred_fallthru
          _
        // Predicated region
        $region53: #{styled_conv_block.1} parent=35 // pred_check
          %p348 = pneg %p225
        $region54: #{styled_conv_block.1} parent=35 // pred_check_branch
          %350 = sbr.rel (%p348) target = $region56
        $region55: #{styled_conv_block.1} parent=35 // pred_region
          %p351 = scmp.lt.s32.totalorder %s17, 1
          %s352 = scalar_select %p351, %s17, 1
          %s353 = smul.addr %s352, 2
          %s354 = smul.addr %s353, 8
          %s355 = scalar_lea.vmem %s8, %s354
        $region56: #{styled_conv_block.1} parent=35 // pred_fallthru
          _
      $region36: #{styled_conv_block.1} parent=5 // pred_fallthru
        _
      %p356 = scmp.le.s32.totalorder 1, %s17
      %p357 = scmp.lt.s32.totalorder %s17, 3
      %p358 = pnand %p356, %p357
      %p359 = pneg %p358
      // Predicated region
      $region57: #{styled_conv_block.1} parent=5 // pred_check
        _
      $region58: #{styled_conv_block.1} parent=5 // pred_check_branch
        %361 = sbr.rel (%p358) target = $region60
      $region59: #{styled_conv_block.1} parent=5 // pred_region
        %s362 = ssub.s32 %s17, 1
        // Predicated region
        $region61: #{styled_conv_block.1} parent=59 // pred_check
          %p363 = pneg %p252
        $region62: #{styled_conv_block.1} parent=59 // pred_check_branch
          %365 = sbr.rel (%p363) target = $region64
        $region63: #{styled_conv_block.1} parent=59 // pred_region
          %366 = dma.done [#allocation5], 16
        $region64: #{styled_conv_block.1} parent=59 // pred_fallthru
          _
        %367 = sfence
        %p368 = scmp.lt.s32.totalorder %s22, 1
        %s369 = scalar_select %p368, %s22, 1
        %s370 = smul.addr %s369, 2
        %s371 = smul.addr %s370, 8
        %s372 = scalar_lea.vmem %s0, %s371
        %p373 = pneg %p43
        %p374 = pneg %p40
        %p375 = scmp.lt.s32.totalorder %s22, 1
        %s376 = scalar_select %p375, %s22, 1
        %s377 = scalar_lea.vmem %s1, %s376
        %p378 = pneg %p69
        %p379 = pneg %p66
        %p380 = scmp.lt.s32.totalorder %s22, 1
        %s381 = scalar_select %p380, %s22, 1
        %s382 = scalar_lea.vmem %s2, %s381
        %p383 = pneg %p95
        %p384 = pneg %p92
        %p385 = pneg %p116
        %p386 = pneg %p113
        %p387 = pneg %p137
        %p388 = pneg %p134
        %p389 = pneg %p158
        %p390 = pneg %p155
        %p391 = pneg %p179
        %p392 = pneg %p176
        %p393 = scmp.lt.s32.totalorder %s22, 1
        %s394 = scalar_select %p393, %s22, 1
        %s395 = smul.addr %s394, 2
        %s396 = smul.addr %s395, 8
        %s397 = scalar_lea.vmem %s7, %s396
        %p398 = pneg %p205
        %p399 = pneg %p202
        %p400 = scmp.lt.s32.totalorder %s22, 1
        %s401 = scalar_select %p400, %s22, 1
        %s402 = smul.addr %s401, 2
        %s403 = smul.addr %s402, 8
        %s404 = scalar_lea.vmem %s8, %s403
        %p405 = pneg %p231
        %p406 = pneg %p228
        %p407 = pneg %p252
        %p408 = pneg %p249
        %p409 = pneg %p278
        %p410 = pneg %p275
        %p411 = scmp.lt.s32.totalorder %s22, 1
        %s412 = scalar_select %p411, %s22, 1
        %s413 = smul.addr %s412, 2
        %s414 = smul.addr %s413, 8
        %s415 = scalar_lea.vmem %s10, %s414
        %p416 = scmp.lt.s32.totalorder %s22, 1
        %s417 = scalar_select %p416, %s22, 1
        %s418 = smul.addr %s417, 2
        %s419 = smul.addr %s418, 8
        %s420 = scalar_lea.vmem %s0, %s419
        %p421 = scmp.lt.s32.totalorder %s22, 1
        %s422 = scalar_select %p421, %s22, 1
        %s423 = scalar_lea.vmem %s1, %s422
        %p424 = scmp.lt.s32.totalorder %s22, 1
        %s425 = scalar_select %p424, %s22, 1
        %s426 = scalar_lea.vmem %s2, %s425
        %p427 = scmp.lt.s32.totalorder %s22, 1
        %s428 = scalar_select %p427, %s22, 1
        %s429 = smul.addr %s428, 2
        %s430 = smul.addr %s429, 8
        %s431 = scalar_lea.vmem %s7, %s430
        %p432 = scmp.lt.s32.totalorder %s22, 1
        %s433 = scalar_select %p432, %s22, 1
        %s434 = smul.addr %s433, 2
        %s435 = smul.addr %s434, 8
        %s436 = scalar_lea.vmem %s8, %s435
        %p437 = scmp.lt.s32.totalorder %s22, 1
        %s438 = scalar_select %p437, %s22, 1
        %s439 = smul.addr %s438, 2
        %s440 = smul.addr %s439, 8
        %s441 = scalar_lea.vmem %s10, %s440
        %v443 = vld [vmem:[%s420] sm:$0xff]
        %v444 = vld [vmem:[%s420 + $0x8] sm:$0xff]
        %v445 = vld [vmem:[%s423] sm:$0x1]
        %v447 = vlaneseq
        %v448 = vshrl.u32 %v447, 7
        %v449 = vsub.s32 0, %v448
        %v450 = vrot.slane %v445, %v449
        %v452 = vmul.f32 %v443, %v450
        %v453 = vmul.f32 %v444, %v450
        %vm454 = vcmask 588800
        %455 = vst.msk [vmem:[#allocation2] sm:$0xff] %vm454, 0.0
        %456 = vst.msk [vmem:[#allocation2 + $0x8] sm:$0xff] %vm454, 0.0
        %vm457 = vcmask 582656
        %458 = vst.msk [vmem:[#allocation2 + $0x10] sm:$0x3] %vm457, 0.0
        %461 = vrot.lane.b32.xlu0 %v452, 4
        %v462 = vpop.permute.xlu0 %461
        %463 = vrot.lane.b32.xlu0 %v453, 4
        %v464 = vpop.permute.xlu0 %463
        %vm467 = vcmask 556064
        %468 = vst.msk [vmem:[#allocation2 + $0x1] sm:$0xff] %vm467, %v462
        %469 = vst.msk [vmem:[#allocation2 + $0x9] sm:$0xff] %vm467, %v464
        %v470 = vld [vmem:[#allocation2] sm:$0xff]
        %v471 = vld [vmem:[#allocation2 + $0x8] sm:$0xff]
        %v472 = vld [vmem:[#allocation2 + $0x10] sm:$0x3]
        %v473 = vpack.c.bf16 %v471, %v470
        %v474 = vld [vmem:[%s3] sm:$0xf]
        %v475 = vld [vmem:[%s3 + $0x4] sm:$0xf]
        %v476 = vld [vmem:[%s3 + $0x8] sm:$0xf]
        %v477 = vld [vmem:[%s3 + $0xc] sm:$0xf]
        %v478 = vld [vmem:[%s3 + $0x10] sm:$0xf]
        %v479 = vld [vmem:[%s3 + $0x14] sm:$0xf]
        %v480 = vld [vmem:[%s3 + $0x18] sm:$0xf]
        %v481 = vld [vmem:[%s3 + $0x1c] sm:$0xf]
        %v482 = vpack.c.bf16 %v472, %v472
        %s483 = scalar_lea.vmem %s3, 96
        %v484 = vld [vmem:[%s483] sm:$0xf]
        %v485 = vld [vmem:[%s483 + $0x4] sm:$0xf]
        %v486 = vld [vmem:[%s483 + $0x8] sm:$0xf]
        %v487 = vld [vmem:[%s483 + $0xc] sm:$0xf]
        %v488 = vld [vmem:[%s483 + $0x10] sm:$0xf]
        %v489 = vld [vmem:[%s483 + $0x14] sm:$0xf]
        %v490 = vld [vmem:[%s483 + $0x18] sm:$0xf]
        %v491 = vld [vmem:[%s483 + $0x1c] sm:$0xf]
        %vm492 = vsmask.f32 7424
        %v494 = vshrl.u32 %v473, 16
        %v496 = vshll.u32 %v473, 16
        %v498 = vrot.slane %v496, 1
        %v499 = vor.u32 %v494, %v498
        %v501 = vshll.u32 %v482, 16
        %v503 = vrot.slane %v501, 1
        %v504 = vsel %vm492, %v499, %v503
        %v513 = vunpack.c.l.b16 %v484
        %v514 = vunpack.c.l.b16 %v485
        %v515 = vunpack.c.l.b16 %v486
        %v516 = vunpack.c.l.b16 %v487
        %v517 = vunpack.c.l.b16 %v488
        %v518 = vunpack.c.l.b16 %v489
        %v519 = vunpack.c.l.b16 %v490
        %v520 = vunpack.c.l.b16 %v491
        %v521 = vpack.c.b16 %v514, %v513
        %v522 = vpack.c.b16 %v516, %v515
        %v523 = vpack.c.b16 %v518, %v517
        %v524 = vpack.c.b16 %v520, %v519
        %vm529 = vcmask 523264
        %v531 = vsel %vm529, %v504, 0
        %533 = vmatprep.subr.bf16.mxu0 0
        %534 = vmatpush1.bf16.msra.mxu0 %v521
        %535 = vmatprep.subr.bf16.mxu0 0
        %536 = vmatpush1.bf16.msra.mxu0 %v522
        %537 = vmatprep.subr.bf16.mxu0 0
        %538 = vmatpush1.bf16.msra.mxu0 %v523
        %539 = vmatprep.subr.bf16.mxu0 0
        %540 = vmatpush1.bf16.msra.mxu0 %v524
        %541 = vmatprep.subr.bf16.mxu0 0
        %542 = vmatpush1.bf16.msra.mxu0 0
        %543 = vmatprep.subr.bf16.mxu0 0
        %544 = vmatpush1.bf16.msra.mxu0 0
        %545 = vmatprep.subr.bf16.mxu0 0
        %546 = vmatpush1.bf16.msra.mxu0 0
        %547 = vmatprep.subr.bf16.mxu0 0
        %548 = vmatpush1.bf16.msra.mxu0 0
        %549 = vmatprep.subr.bf16.mxu0 0
        %550 = vmatpush1.bf16.msra.mxu0 0
        %551 = vmatprep.subr.bf16.mxu0 0
        %552 = vmatpush1.bf16.msra.mxu0 0
        %553 = vmatprep.subr.bf16.mxu0 0
        %554 = vmatpush1.bf16.msra.mxu0 0
        %555 = vmatprep.subr.bf16.mxu0 0
        %556 = vmatpush1.bf16.msra.mxu0 0
        %557 = vmatprep.subr.bf16.mxu0 0
        %558 = vmatpush1.bf16.msra.mxu0 0
        %559 = vmatprep.subr.bf16.mxu0 0
        %560 = vmatpush1.bf16.msra.mxu0 0
        %561 = vmatprep.subr.bf16.mxu0 0
        %562 = vmatpush1.bf16.msra.mxu0 0
        %563 = vmatprep.subr.bf16.mxu0 0
        %564 = vmatpush1.bf16.msra.mxu0 0
        %565 = vmatprep.mubr.bf16.mxu0 0
        %566 = vmatmul.mubr.bf16.gmra.mrb[0].mxu0 %v531
        %v567 = vpop.f32.mrb[0].mxu0
        %v568 = vadd.f32 0.0, %v567
        %v569 = vpop.f32.mrb[0].mxu0
        %v570 = vpop.f32.mrb[0].mxu0
        %v571 = vadd.f32 0.0, %v570
        %v572 = vpop.f32.mrb[0].mxu0
        %573 = vdwg.mxu0
        %v582 = vunpack.c.l.b16 %v474
        %v583 = vunpack.c.l.b16 %v475
        %v584 = vunpack.c.l.b16 %v476
        %v585 = vunpack.c.l.b16 %v477
        %v586 = vunpack.c.l.b16 %v478
        %v587 = vunpack.c.l.b16 %v479
        %v588 = vunpack.c.l.b16 %v480
        %v589 = vunpack.c.l.b16 %v481
        %v590 = vpack.c.b16 %v583, %v582
        %v591 = vpack.c.b16 %v585, %v584
        %v592 = vpack.c.b16 %v587, %v586
        %v593 = vpack.c.b16 %v589, %v588
        %v598 = vsel %vm529, %v473, 0
        %600 = vmatprep.subr.bf16.mxu0 0
        %601 = vmatpush1.bf16.msra.mxu0 %v590
        %602 = vmatprep.subr.bf16.mxu0 0
        %603 = vmatpush1.bf16.msra.mxu0 %v591
        %604 = vmatprep.subr.bf16.mxu0 0
        %605 = vmatpush1.bf16.msra.mxu0 %v592
        %606 = vmatprep.subr.bf16.mxu0 0
        %607 = vmatpush1.bf16.msra.mxu0 %v593
        %608 = vmatprep.subr.bf16.mxu0 0
        %609 = vmatpush1.bf16.msra.mxu0 0
        %610 = vmatprep.subr.bf16.mxu0 0
        %611 = vmatpush1.bf16.msra.mxu0 0
        %612 = vmatprep.subr.bf16.mxu0 0
        %613 = vmatpush1.bf16.msra.mxu0 0
        %614 = vmatprep.subr.bf16.mxu0 0
        %615 = vmatpush1.bf16.msra.mxu0 0
        %616 = vmatprep.subr.bf16.mxu0 0
        %617 = vmatpush1.bf16.msra.mxu0 0
        %618 = vmatprep.subr.bf16.mxu0 0
        %619 = vmatpush1.bf16.msra.mxu0 0
        %620 = vmatprep.subr.bf16.mxu0 0
        %621 = vmatpush1.bf16.msra.mxu0 0
        %622 = vmatprep.subr.bf16.mxu0 0
        %623 = vmatpush1.bf16.msra.mxu0 0
        %624 = vmatprep.subr.bf16.mxu0 0
        %625 = vmatpush1.bf16.msra.mxu0 0
        %626 = vmatprep.subr.bf16.mxu0 0
        %627 = vmatpush1.bf16.msra.mxu0 0
        %628 = vmatprep.subr.bf16.mxu0 0
        %629 = vmatpush1.bf16.msra.mxu0 0
        %630 = vmatprep.subr.bf16.mxu0 0
        %631 = vmatpush1.bf16.msra.mxu0 0
        %632 = vmatprep.mubr.bf16.mxu0 0
        %633 = vmatmul.mubr.bf16.gmra.mrb[0].mxu0 %v598
        %v634 = vpop.f32.mrb[0].mxu0
        %v635 = vadd.f32 %v568, %v634
        %v636 = vpop.f32.mrb[0].mxu0
        %v637 = vpop.f32.mrb[0].mxu0
        %v638 = vadd.f32 %v571, %v637
        %v639 = vpop.f32.mrb[0].mxu0
        %640 = vdwg.mxu0
        %s641 = scalar_lea.vmem %s3, 192
        %v642 = vld [vmem:[%s641] sm:$0xf]
        %v643 = vld [vmem:[%s641 + $0x4] sm:$0xf]
        %v644 = vld [vmem:[%s641 + $0x8] sm:$0xf]
        %v645 = vld [vmem:[%s641 + $0xc] sm:$0xf]
        %v646 = vld [vmem:[%s641 + $0x10] sm:$0xf]
        %v647 = vld [vmem:[%s641 + $0x14] sm:$0xf]
        %v648 = vld [vmem:[%s641 + $0x18] sm:$0xf]
        %v649 = vld [vmem:[%s641 + $0x1c] sm:$0xf]
        %vm652 = vcmask 1046528
        %v653 = vrot.slane %v473, 1
        %v654 = vrot.slane %v482, 1
        %v655 = vsel %vm652, %v653, %v654
        %v664 = vunpack.c.l.b16 %v642
        %v665 = vunpack.c.l.b16 %v643
        %v666 = vunpack.c.l.b16 %v644
        %v667 = vunpack.c.l.b16 %v645
        %v668 = vunpack.c.l.b16 %v646
        %v669 = vunpack.c.l.b16 %v647
        %v670 = vunpack.c.l.b16 %v648
        %v671 = vunpack.c.l.b16 %v649
        %v672 = vpack.c.b16 %v665, %v664
        %v673 = vpack.c.b16 %v667, %v666
        %v674 = vpack.c.b16 %v669, %v668
        %v675 = vpack.c.b16 %v671, %v670
        %v681 = vsel %vm529, %v655, 0
        %683 = vmatprep.subr.bf16.mxu0 0
        %684 = vmatpush1.bf16.msra.mxu0 %v672
        %685 = vmatprep.subr.bf16.mxu0 0
        %686 = vmatpush1.bf16.msra.mxu0 %v673
        %687 = vmatprep.subr.bf16.mxu0 0
        %688 = vmatpush1.bf16.msra.mxu0 %v674
        %689 = vmatprep.subr.bf16.mxu0 0
        %690 = vmatpush1.bf16.msra.mxu0 %v675
        %691 = vmatprep.subr.bf16.mxu0 0
        %692 = vmatpush1.bf16.msra.mxu0 0
        %693 = vmatprep.subr.bf16.mxu0 0
        %694 = vmatpush1.bf16.msra.mxu0 0
        %695 = vmatprep.subr.bf16.mxu0 0
        %696 = vmatpush1.bf16.msra.mxu0 0
        %697 = vmatprep.subr.bf16.mxu0 0
        %698 = vmatpush1.bf16.msra.mxu0 0
        %699 = vmatprep.subr.bf16.mxu0 0
        %700 = vmatpush1.bf16.msra.mxu0 0
        %701 = vmatprep.subr.bf16.mxu0 0
        %702 = vmatpush1.bf16.msra.mxu0 0
        %703 = vmatprep.subr.bf16.mxu0 0
        %704 = vmatpush1.bf16.msra.mxu0 0
        %705 = vmatprep.subr.bf16.mxu0 0
        %706 = vmatpush1.bf16.msra.mxu0 0
        %707 = vmatprep.subr.bf16.mxu0 0
        %708 = vmatpush1.bf16.msra.mxu0 0
        %709 = vmatprep.subr.bf16.mxu0 0
        %710 = vmatpush1.bf16.msra.mxu0 0
        %711 = vmatprep.subr.bf16.mxu0 0
        %712 = vmatpush1.bf16.msra.mxu0 0
        %713 = vmatprep.subr.bf16.mxu0 0
        %714 = vmatpush1.bf16.msra.mxu0 0
        %715 = vmatprep.mubr.bf16.mxu0 0
        %716 = vmatmul.mubr.bf16.gmra.mrb[0].mxu0 %v681
        %v717 = vpop.f32.mrb[0].mxu0
        %v718 = vadd.f32 0.0, %v717
        %v719 = vpop.f32.mrb[0].mxu0
        %v720 = vpop.f32.mrb[0].mxu0
        %v721 = vadd.f32 0.0, %v720
        %v722 = vpop.f32.mrb[0].mxu0
        %723 = vdwg.mxu0
        %v724 = vadd.f32 %v635, %v718
        %v725 = vadd.f32 %v638, %v721
        %s726 = scalar_lea.vmem %s3, 32
        %v727 = vld [vmem:[%s726] sm:$0xf]
        %v728 = vld [vmem:[%s726 + $0x4] sm:$0xf]
        %v729 = vld [vmem:[%s726 + $0x8] sm:$0xf]
        %v730 = vld [vmem:[%s726 + $0xc] sm:$0xf]
        %v731 = vld [vmem:[%s726 + $0x10] sm:$0xf]
        %v732 = vld [vmem:[%s726 + $0x14] sm:$0xf]
        %v733 = vld [vmem:[%s726 + $0x18] sm:$0xf]
        %v734 = vld [vmem:[%s726 + $0x1c] sm:$0xf]
        %735 = vrot.lane.b32.xlu0 %v473, 124
        %v736 = vpop.permute.xlu0 %735
        %v745 = vunpack.c.l.b16 %v727
        %v746 = vunpack.c.l.b16 %v728
        %v747 = vunpack.c.l.b16 %v729
        %v748 = vunpack.c.l.b16 %v730
        %v749 = vunpack.c.l.b16 %v731
        %v750 = vunpack.c.l.b16 %v732
        %v751 = vunpack.c.l.b16 %v733
        %v752 = vunpack.c.l.b16 %v734
        %v753 = vpack.c.b16 %v746, %v745
        %v754 = vpack.c.b16 %v748, %v747
        %v755 = vpack.c.b16 %v750, %v749
        %v756 = vpack.c.b16 %v752, %v751
        %v762 = vsel %vm529, %v736, 0
        %764 = vmatprep.subr.bf16.mxu0 0
        %765 = vmatpush1.bf16.msra.mxu0 %v753
        %766 = vmatprep.subr.bf16.mxu0 0
        %767 = vmatpush1.bf16.msra.mxu0 %v754
        %768 = vmatprep.subr.bf16.mxu0 0
        %769 = vmatpush1.bf16.msra.mxu0 %v755
        %770 = vmatprep.subr.bf16.mxu0 0
        %771 = vmatpush1.bf16.msra.mxu0 %v756
        %772 = vmatprep.subr.bf16.mxu0 0
        %773 = vmatpush1.bf16.msra.mxu0 0
        %774 = vmatprep.subr.bf16.mxu0 0
        %775 = vmatpush1.bf16.msra.mxu0 0
        %776 = vmatprep.subr.bf16.mxu0 0
        %777 = vmatpush1.bf16.msra.mxu0 0
        %778 = vmatprep.subr.bf16.mxu0 0
        %779 = vmatpush1.bf16.msra.mxu0 0
        %780 = vmatprep.subr.bf16.mxu0 0
        %781 = vmatpush1.bf16.msra.mxu0 0
        %782 = vmatprep.subr.bf16.mxu0 0
        %783 = vmatpush1.bf16.msra.mxu0 0
        %784 = vmatprep.subr.bf16.mxu0 0
        %785 = vmatpush1.bf16.msra.mxu0 0
        %786 = vmatprep.subr.bf16.mxu0 0
        %787 = vmatpush1.bf16.msra.mxu0 0
        %788 = vmatprep.subr.bf16.mxu0 0
        %789 = vmatpush1.bf16.msra.mxu0 0
        %790 = vmatprep.subr.bf16.mxu0 0
        %791 = vmatpush1.bf16.msra.mxu0 0
        %792 = vmatprep.subr.bf16.mxu0 0
        %793 = vmatpush1.bf16.msra.mxu0 0
        %794 = vmatprep.subr.bf16.mxu0 0
        %795 = vmatpush1.bf16.msra.mxu0 0
        %796 = vmatprep.mubr.bf16.mxu0 0
        %797 = vmatmul.mubr.bf16.gmra.mrb[0].mxu0 %v762
        %v798 = vpop.f32.mrb[0].mxu0
        %v799 = vadd.f32 0.0, %v798
        %v800 = vpop.f32.mrb[0].mxu0
        %v801 = vpop.f32.mrb[0].mxu0
        %v802 = vadd.f32 0.0, %v801
        %v803 = vpop.f32.mrb[0].mxu0
        %804 = vdwg.mxu0
        %v805 = vadd.f32 %v724, %v799
        %v806 = vadd.f32 %v725, %v802
        %s807 = scalar_lea.vmem %s3, 128
        %v808 = vld [vmem:[%s807] sm:$0xf]
        %v809 = vld [vmem:[%s807 + $0x4] sm:$0xf]
        %v810 = vld [vmem:[%s807 + $0x8] sm:$0xf]
        %v811 = vld [vmem:[%s807 + $0xc] sm:$0xf]
        %v812 = vld [vmem:[%s807 + $0x10] sm:$0xf]
        %v813 = vld [vmem:[%s807 + $0x14] sm:$0xf]
        %v814 = vld [vmem:[%s807 + $0x18] sm:$0xf]
        %v815 = vld [vmem:[%s807 + $0x1c] sm:$0xf]
        %816 = vrot.lane.b32.xlu0 %v504, 124
        %v817 = vpop.permute.xlu0 %816
        %v826 = vunpack.c.l.b16 %v808
        %v827 = vunpack.c.l.b16 %v809
        %v828 = vunpack.c.l.b16 %v810
        %v829 = vunpack.c.l.b16 %v811
        %v830 = vunpack.c.l.b16 %v812
        %v831 = vunpack.c.l.b16 %v813
        %v832 = vunpack.c.l.b16 %v814
        %v833 = vunpack.c.l.b16 %v815
        %v834 = vpack.c.b16 %v827, %v826
        %v835 = vpack.c.b16 %v829, %v828
        %v836 = vpack.c.b16 %v831, %v830
        %v837 = vpack.c.b16 %v833, %v832
        %v843 = vsel %vm529, %v817, 0
        %845 = vmatprep.subr.bf16.mxu0 0
        %846 = vmatpush1.bf16.msra.mxu0 %v834
        %847 = vmatprep.subr.bf16.mxu0 0
        %848 = vmatpush1.bf16.msra.mxu0 %v835
        %849 = vmatprep.subr.bf16.mxu0 0
        %850 = vmatpush1.bf16.msra.mxu0 %v836
        %851 = vmatprep.subr.bf16.mxu0 0
        %852 = vmatpush1.bf16.msra.mxu0 %v837
        %853 = vmatprep.subr.bf16.mxu0 0
        %854 = vmatpush1.bf16.msra.mxu0 0
        %855 = vmatprep.subr.bf16.mxu0 0
        %856 = vmatpush1.bf16.msra.mxu0 0
        %857 = vmatprep.subr.bf16.mxu0 0
        %858 = vmatpush1.bf16.msra.mxu0 0
        %859 = vmatprep.subr.bf16.mxu0 0
        %860 = vmatpush1.bf16.msra.mxu0 0
        %861 = vmatprep.subr.bf16.mxu0 0
        %862 = vmatpush1.bf16.msra.mxu0 0
        %863 = vmatprep.subr.bf16.mxu0 0
        %864 = vmatpush1.bf16.msra.mxu0 0
        %865 = vmatprep.subr.bf16.mxu0 0
        %866 = vmatpush1.bf16.msra.mxu0 0
        %867 = vmatprep.subr.bf16.mxu0 0
        %868 = vmatpush1.bf16.msra.mxu0 0
        %869 = vmatprep.subr.bf16.mxu0 0
        %870 = vmatpush1.bf16.msra.mxu0 0
        %871 = vmatprep.subr.bf16.mxu0 0
        %872 = vmatpush1.bf16.msra.mxu0 0
        %873 = vmatprep.subr.bf16.mxu0 0
        %874 = vmatpush1.bf16.msra.mxu0 0
        %875 = vmatprep.subr.bf16.mxu0 0
        %876 = vmatpush1.bf16.msra.mxu0 0
        %877 = vmatprep.mubr.bf16.mxu0 0
        %878 = vmatmul.mubr.bf16.gmra.mrb[0].mxu0 %v843
        %v879 = vpop.f32.mrb[0].mxu0
        %v880 = vadd.f32 0.0, %v879
        %v881 = vpop.f32.mrb[0].mxu0
        %v882 = vpop.f32.mrb[0].mxu0
        %v883 = vadd.f32 0.0, %v882
        %v884 = vpop.f32.mrb[0].mxu0
        %885 = vdwg.mxu0
        %v886 = vadd.f32 %v805, %v880
        %v887 = vadd.f32 %v806, %v883
        %s888 = scalar_lea.vmem %s3, 224
        %v889 = vld [vmem:[%s888] sm:$0xf]
        %v890 = vld [vmem:[%s888 + $0x4] sm:$0xf]
        %v891 = vld [vmem:[%s888 + $0x8] sm:$0xf]
        %v892 = vld [vmem:[%s888 + $0xc] sm:$0xf]
        %v893 = vld [vmem:[%s888 + $0x10] sm:$0xf]
        %v894 = vld [vmem:[%s888 + $0x14] sm:$0xf]
        %v895 = vld [vmem:[%s888 + $0x18] sm:$0xf]
        %v896 = vld [vmem:[%s888 + $0x1c] sm:$0xf]
        %897 = vrot.lane.b32.xlu0 %v655, 124
        %v898 = vpop.permute.xlu0 %897
        %v907 = vunpack.c.l.b16 %v889
        %v908 = vunpack.c.l.b16 %v890
        %v909 = vunpack.c.l.b16 %v891
        %v910 = vunpack.c.l.b16 %v892
        %v911 = vunpack.c.l.b16 %v893
        %v912 = vunpack.c.l.b16 %v894
        %v913 = vunpack.c.l.b16 %v895
        %v914 = vunpack.c.l.b16 %v896
        %v915 = vpack.c.b16 %v908, %v907
        %v916 = vpack.c.b16 %v910, %v909
        %v917 = vpack.c.b16 %v912, %v911
        %v918 = vpack.c.b16 %v914, %v913
        %v924 = vsel %vm529, %v898, 0
        %926 = vmatprep.subr.bf16.mxu0 0
        %927 = vmatpush1.bf16.msra.mxu0 %v915
        %928 = vmatprep.subr.bf16.mxu0 0
        %929 = vmatpush1.bf16.msra.mxu0 %v916
        %930 = vmatprep.subr.bf16.mxu0 0
        %931 = vmatpush1.bf16.msra.mxu0 %v917
        %932 = vmatprep.subr.bf16.mxu0 0
        %933 = vmatpush1.bf16.msra.mxu0 %v918
        %934 = vmatprep.subr.bf16.mxu0 0
        %935 = vmatpush1.bf16.msra.mxu0 0
        %936 = vmatprep.subr.bf16.mxu0 0
        %937 = vmatpush1.bf16.msra.mxu0 0
        %938 = vmatprep.subr.bf16.mxu0 0
        %939 = vmatpush1.bf16.msra.mxu0 0
        %940 = vmatprep.subr.bf16.mxu0 0
        %941 = vmatpush1.bf16.msra.mxu0 0
        %942 = vmatprep.subr.bf16.mxu0 0
        %943 = vmatpush1.bf16.msra.mxu0 0
        %944 = vmatprep.subr.bf16.mxu0 0
        %945 = vmatpush1.bf16.msra.mxu0 0
        %946 = vmatprep.subr.bf16.mxu0 0
        %947 = vmatpush1.bf16.msra.mxu0 0
        %948 = vmatprep.subr.bf16.mxu0 0
        %949 = vmatpush1.bf16.msra.mxu0 0
        %950 = vmatprep.subr.bf16.mxu0 0
        %951 = vmatpush1.bf16.msra.mxu0 0
        %952 = vmatprep.subr.bf16.mxu0 0
        %953 = vmatpush1.bf16.msra.mxu0 0
        %954 = vmatprep.subr.bf16.mxu0 0
        %955 = vmatpush1.bf16.msra.mxu0 0
        %956 = vmatprep.subr.bf16.mxu0 0
        %957 = vmatpush1.bf16.msra.mxu0 0
        %958 = vmatprep.mubr.bf16.mxu0 0
        %959 = vmatmul.mubr.bf16.gmra.mrb[0].mxu0 %v924
        %v960 = vpop.f32.mrb[0].mxu0
        %v961 = vadd.f32 0.0, %v960
        %v962 = vpop.f32.mrb[0].mxu0
        %v963 = vpop.f32.mrb[0].mxu0
        %v964 = vadd.f32 0.0, %v963
        %v965 = vpop.f32.mrb[0].mxu0
        %966 = vdwg.mxu0
        %v967 = vadd.f32 %v886, %v961
        %v968 = vadd.f32 %v887, %v964
        %s969 = scalar_lea.vmem %s3, 64
        %v970 = vld [vmem:[%s969] sm:$0xf]
        %v971 = vld [vmem:[%s969 + $0x4] sm:$0xf]
        %v972 = vld [vmem:[%s969 + $0x8] sm:$0xf]
        %v973 = vld [vmem:[%s969 + $0xc] sm:$0xf]
        %v974 = vld [vmem:[%s969 + $0x10] sm:$0xf]
        %v975 = vld [vmem:[%s969 + $0x14] sm:$0xf]
        %v976 = vld [vmem:[%s969 + $0x18] sm:$0xf]
        %v977 = vld [vmem:[%s969 + $0x1c] sm:$0xf]
        %978 = vrot.lane.b32.xlu0 %v473, 120
        %v979 = vpop.permute.xlu0 %978
        %v988 = vunpack.c.l.b16 %v970
        %v989 = vunpack.c.l.b16 %v971
        %v990 = vunpack.c.l.b16 %v972
        %v991 = vunpack.c.l.b16 %v973
        %v992 = vunpack.c.l.b16 %v974
        %v993 = vunpack.c.l.b16 %v975
        %v994 = vunpack.c.l.b16 %v976
        %v995 = vunpack.c.l.b16 %v977
        %v996 = vpack.c.b16 %v989, %v988
        %v997 = vpack.c.b16 %v991, %v990
        %v998 = vpack.c.b16 %v993, %v992
        %v999 = vpack.c.b16 %v995, %v994
        %v1005 = vsel %vm529, %v979, 0
        %1007 = vmatprep.subr.bf16.mxu0 0
        %1008 = vmatpush1.bf16.msra.mxu0 %v996
        %1009 = vmatprep.subr.bf16.mxu0 0
        %1010 = vmatpush1.bf16.msra.mxu0 %v997
        %1011 = vmatprep.subr.bf16.mxu0 0
        %1012 = vmatpush1.bf16.msra.mxu0 %v998
        %1013 = vmatprep.subr.bf16.mxu0 0
        %1014 = vmatpush1.bf16.msra.mxu0 %v999
        %1015 = vmatprep.subr.bf16.mxu0 0
        %1016 = vmatpush1.bf16.msra.mxu0 0
        %1017 = vmatprep.subr.bf16.mxu0 0
        %1018 = vmatpush1.bf16.msra.mxu0 0
        %1019 = vmatprep.subr.bf16.mxu0 0
        %1020 = vmatpush1.bf16.msra.mxu0 0
        %1021 = vmatprep.subr.bf16.mxu0 0
        %1022 = vmatpush1.bf16.msra.mxu0 0
        %1023 = vmatprep.subr.bf16.mxu0 0
        %1024 = vmatpush1.bf16.msra.mxu0 0
        %1025 = vmatprep.subr.bf16.mxu0 0
        %1026 = vmatpush1.bf16.msra.mxu0 0
        %1027 = vmatprep.subr.bf16.mxu0 0
        %1028 = vmatpush1.bf16.msra.mxu0 0
        %1029 = vmatprep.subr.bf16.mxu0 0
        %1030 = vmatpush1.bf16.msra.mxu0 0
        %1031 = vmatprep.subr.bf16.mxu0 0
        %1032 = vmatpush1.bf16.msra.mxu0 0
        %1033 = vmatprep.subr.bf16.mxu0 0
        %1034 = vmatpush1.bf16.msra.mxu0 0
        %1035 = vmatprep.subr.bf16.mxu0 0
        %1036 = vmatpush1.bf16.msra.mxu0 0
        %1037 = vmatprep.subr.bf16.mxu0 0
        %1038 = vmatpush1.bf16.msra.mxu0 0
        %1039 = vmatprep.mubr.bf16.mxu0 0
        %1040 = vmatmul.mubr.bf16.gmra.mrb[0].mxu0 %v1005
        %v1041 = vpop.f32.mrb[0].mxu0
        %v1042 = vadd.f32 0.0, %v1041
        %v1043 = vpop.f32.mrb[0].mxu0
        %v1044 = vpop.f32.mrb[0].mxu0
        %v1045 = vadd.f32 0.0, %v1044
        %v1046 = vpop.f32.mrb[0].mxu0
        %1047 = vdwg.mxu0
        %v1048 = vadd.f32 %v967, %v1042
        %v1049 = vadd.f32 %v968, %v1045
        %s1050 = scalar_lea.vmem %s3, 160
        %v1051 = vld [vmem:[%s1050] sm:$0xf]
        %v1052 = vld [vmem:[%s1050 + $0x4] sm:$0xf]
        %v1053 = vld [vmem:[%s1050 + $0x8] sm:$0xf]
        %v1054 = vld [vmem:[%s1050 + $0xc] sm:$0xf]
        %v1055 = vld [vmem:[%s1050 + $0x10] sm:$0xf]
        %v1056 = vld [vmem:[%s1050 + $0x14] sm:$0xf]
        %v1057 = vld [vmem:[%s1050 + $0x18] sm:$0xf]
        %v1058 = vld [vmem:[%s1050 + $0x1c] sm:$0xf]
        %1059 = vrot.lane.b32.xlu0 %v504, 120
        %v1060 = vpop.permute.xlu0 %1059
        %v1069 = vunpack.c.l.b16 %v1051
        %v1070 = vunpack.c.l.b16 %v1052
        %v1071 = vunpack.c.l.b16 %v1053
        %v1072 = vunpack.c.l.b16 %v1054
        %v1073 = vunpack.c.l.b16 %v1055
        %v1074 = vunpack.c.l.b16 %v1056
        %v1075 = vunpack.c.l.b16 %v1057
        %v1076 = vunpack.c.l.b16 %v1058
        %v1077 = vpack.c.b16 %v1070, %v1069
        %v1078 = vpack.c.b16 %v1072, %v1071
        %v1079 = vpack.c.b16 %v1074, %v1073
        %v1080 = vpack.c.b16 %v1076, %v1075
        %v1086 = vsel %vm529, %v1060, 0
        %1088 = vmatprep.subr.bf16.mxu0 0
        %1089 = vmatpush1.bf16.msra.mxu0 %v1077
        %1090 = vmatprep.subr.bf16.mxu0 0
        %1091 = vmatpush1.bf16.msra.mxu0 %v1078
        %1092 = vmatprep.subr.bf16.mxu0 0
        %1093 = vmatpush1.bf16.msra.mxu0 %v1079
        %1094 = vmatprep.subr.bf16.mxu0 0
        %1095 = vmatpush1.bf16.msra.mxu0 %v1080
        %1096 = vmatprep.subr.bf16.mxu0 0
        %1097 = vmatpush1.bf16.msra.mxu0 0
        %1098 = vmatprep.subr.bf16.mxu0 0
        %1099 = vmatpush1.bf16.msra.mxu0 0
        %1100 = vmatprep.subr.bf16.mxu0 0
        %1101 = vmatpush1.bf16.msra.mxu0 0
        %1102 = vmatprep.subr.bf16.mxu0 0
        %1103 = vmatpush1.bf16.msra.mxu0 0
        %1104 = vmatprep.subr.bf16.mxu0 0
        %1105 = vmatpush1.bf16.msra.mxu0 0
        %1106 = vmatprep.subr.bf16.mxu0 0
        %1107 = vmatpush1.bf16.msra.mxu0 0
        %1108 = vmatprep.subr.bf16.mxu0 0
        %1109 = vmatpush1.bf16.msra.mxu0 0
        %1110 = vmatprep.subr.bf16.mxu0 0
        %1111 = vmatpush1.bf16.msra.mxu0 0
        %1112 = vmatprep.subr.bf16.mxu0 0
        %1113 = vmatpush1.bf16.msra.mxu0 0
        %1114 = vmatprep.subr.bf16.mxu0 0
        %1115 = vmatpush1.bf16.msra.mxu0 0
        %1116 = vmatprep.subr.bf16.mxu0 0
        %1117 = vmatpush1.bf16.msra.mxu0 0
        %1118 = vmatprep.subr.bf16.mxu0 0
        %1119 = vmatpush1.bf16.msra.mxu0 0
        %1120 = vmatprep.mubr.bf16.mxu0 0
        %1121 = vmatmul.mubr.bf16.gmra.mrb[0].mxu0 %v1086
        %v1122 = vpop.f32.mrb[0].mxu0
        %v1123 = vadd.f32 0.0, %v1122
        %v1124 = vpop.f32.mrb[0].mxu0
        %v1125 = vpop.f32.mrb[0].mxu0
        %v1126 = vadd.f32 0.0, %v1125
        %v1127 = vpop.f32.mrb[0].mxu0
        %1128 = vdwg.mxu0
        %v1129 = vadd.f32 %v1048, %v1123
        %v1130 = vadd.f32 %v1049, %v1126
        %s1131 = scalar_lea.vmem %s3, 256
        %v1132 = vld [vmem:[%s1131] sm:$0xf]
        %v1133 = vld [vmem:[%s1131 + $0x4] sm:$0xf]
        %v1134 = vld [vmem:[%s1131 + $0x8] sm:$0xf]
        %v1135 = vld [vmem:[%s1131 + $0xc] sm:$0xf]
        %v1136 = vld [vmem:[%s1131 + $0x10] sm:$0xf]
        %v1137 = vld [vmem:[%s1131 + $0x14] sm:$0xf]
        %v1138 = vld [vmem:[%s1131 + $0x18] sm:$0xf]
        %v1139 = vld [vmem:[%s1131 + $0x1c] sm:$0xf]
        %1140 = vrot.lane.b32.xlu0 %v655, 120
        %v1141 = vpop.permute.xlu0 %1140
        %v1150 = vunpack.c.l.b16 %v1132
        %v1151 = vunpack.c.l.b16 %v1133
        %v1152 = vunpack.c.l.b16 %v1134
        %v1153 = vunpack.c.l.b16 %v1135
        %v1154 = vunpack.c.l.b16 %v1136
        %v1155 = vunpack.c.l.b16 %v1137
        %v1156 = vunpack.c.l.b16 %v1138
        %v1157 = vunpack.c.l.b16 %v1139
        %v1158 = vpack.c.b16 %v1151, %v1150
        %v1159 = vpack.c.b16 %v1153, %v1152
        %v1160 = vpack.c.b16 %v1155, %v1154
        %v1161 = vpack.c.b16 %v1157, %v1156
        %v1167 = vsel %vm529, %v1141, 0
        %1169 = vmatprep.subr.bf16.mxu0 0
        %1170 = vmatpush1.bf16.msra.mxu0 %v1158
        %1171 = vmatprep.subr.bf16.mxu0 0
        %1172 = vmatpush1.bf16.msra.mxu0 %v1159
        %1173 = vmatprep.subr.bf16.mxu0 0
        %1174 = vmatpush1.bf16.msra.mxu0 %v1160
        %1175 = vmatprep.subr.bf16.mxu0 0
        %1176 = vmatpush1.bf16.msra.mxu0 %v1161
        %1177 = vmatprep.subr.bf16.mxu0 0
        %1178 = vmatpush1.bf16.msra.mxu0 0
        %1179 = vmatprep.subr.bf16.mxu0 0
        %1180 = vmatpush1.bf16.msra.mxu0 0
        %1181 = vmatprep.subr.bf16.mxu0 0
        %1182 = vmatpush1.bf16.msra.mxu0 0
        %1183 = vmatprep.subr.bf16.mxu0 0
        %1184 = vmatpush1.bf16.msra.mxu0 0
        %1185 = vmatprep.subr.bf16.mxu0 0
        %1186 = vmatpush1.bf16.msra.mxu0 0
        %1187 = vmatprep.subr.bf16.mxu0 0
        %1188 = vmatpush1.bf16.msra.mxu0 0
        %1189 = vmatprep.subr.bf16.mxu0 0
        %1190 = vmatpush1.bf16.msra.mxu0 0
        %1191 = vmatprep.subr.bf16.mxu0 0
        %1192 = vmatpush1.bf16.msra.mxu0 0
        %1193 = vmatprep.subr.bf16.mxu0 0
        %1194 = vmatpush1.bf16.msra.mxu0 0
        %1195 = vmatprep.subr.bf16.mxu0 0
        %1196 = vmatpush1.bf16.msra.mxu0 0
        %1197 = vmatprep.subr.bf16.mxu0 0
        %1198 = vmatpush1.bf16.msra.mxu0 0
        %1199 = vmatprep.subr.bf16.mxu0 0
        %1200 = vmatpush1.bf16.msra.mxu0 0
        %1201 = vmatprep.mubr.bf16.mxu0 0
        %1202 = vmatmul.mubr.bf16.gmra.mrb[0].mxu0 %v1167
        %v1203 = vpop.f32.mrb[0].mxu0
        %v1204 = vadd.f32 0.0, %v1203
        %v1205 = vpop.f32.mrb[0].mxu0
        %v1206 = vpop.f32.mrb[0].mxu0
        %v1207 = vadd.f32 0.0, %v1206
        %v1208 = vpop.f32.mrb[0].mxu0
        %1209 = vdwg.mxu0
        %v1210 = vadd.f32 %v1129, %v1204
        %v1211 = vadd.f32 %v1130, %v1207
        %v1212 = vld [vmem:[%s4] sm:$0x1]
        %v1214 = vlaneseq
        %v1215 = vshrl.u32 %v1214, 7
        %v1216 = vsub.s32 0, %v1215
        %v1217 = vrot.slane %v1212, %v1216
        %v1219 = vadd.f32 %v1210, %v1217
        %v1220 = vadd.f32 %v1211, %v1217
        %s1221 = sld [smem:[#allocation4]]
        %v1222 = vld [vmem:[%s431] sm:$0xff]
        %v1223 = vld [vmem:[%s431 + $0x8] sm:$0xff]
        %v1224 = vstv %s1221
        %v1225 = vmul.f32 %v1224, %v1222
        %v1226 = vmul.f32 %v1224, %v1223
        %v1227 = vadd.f32 %v1219, %v1225
        %v1228 = vadd.f32 %v1220, %v1226
        %vm1229 = vcmp.ge.f32.partialorder %v1227, 0.0
        %vm1230 = vcmp.ge.f32.partialorder %v1228, 0.0
        %v1231 = vmul.f32 %v1227, 0.2
        %v1232 = vmul.f32 %v1228, 0.2
        %v1233 = vsel %vm1229, %v1227, %v1231
        %v1234 = vsel %vm1230, %v1228, %v1232
        %v1235 = vld [vmem:[%s426] sm:$0x1]
        %v1237 = vlaneseq
        %v1238 = vshrl.u32 %v1237, 7
        %v1239 = vsub.s32 0, %v1238
        %v1240 = vrot.slane %v1235, %v1239
        %v1242 = vmul.f32 %v1233, %v1240
        %v1243 = vmul.f32 %v1234, %v1240
        %1244 = vst [vmem:[#allocation3] sm:$0xff] 0.0
        %vm1245 = vcmask 130048
        %1246 = vst.msk [vmem:[#allocation3 + $0x8] sm:$0xff] %vm1245, 0.0
        %1247 = vst [vmem:[#allocation3 + $0x10] sm:$0xff] 0.0
        %1248 = vst.msk [vmem:[#allocation3 + $0x18] sm:$0xff] %vm1245, 0.0
        %1249 = vst [vmem:[#allocation3 + $0x20] sm:$0x3] 0.0
        %vm1250 = vcmask 123904
        %1251 = vst.msk [vmem:[#allocation3 + $0x28] sm:$0x3] %vm1250, 0.0
        %vm1254 = vcmask 1040384
        %v1255 = vrot.slane %v1242, 7
        %v1256 = vrot.slane %v1243, 7
        %v1257 = vsel %vm1254, %v1255, %v1256
        %1258 = vrot.lane.b32.xlu0 %v1255, 8
        %v1259 = vpop.permute.xlu0 %1258
        %1260 = vrot.lane.b32.xlu0 %v1257, 8
        %v1261 = vpop.permute.xlu0 %1260
        %1262 = vrot.lane.b32.xlu0 %v1256, 8
        %v1263 = vpop.permute.xlu0 %1262
        %vm1267 = vcmask 1047617
        %1268 = vst.msk [vmem:[#allocation3] sm:$0xfe] %vm1267, %v1259
        %vm1269 = vcmask 64513
        %1270 = vst.msk [vmem:[#allocation3 + $0x8] sm:$0xfe] %vm1269, %v1259
        %vm1271 = vcmask 1047616
        %1272 = vst.msk [vmem:[#allocation3 + $0x10] sm:$0xff] %vm1271, %v1261
        %vm1273 = vcmask 64512
        %1274 = vst.msk [vmem:[#allocation3 + $0x18] sm:$0xff] %vm1273, %v1261
        %vm1275 = vcmask 1040448
        %1276 = vst.msk [vmem:[#allocation3 + $0x20] sm:$0x1] %vm1275, %v1263
        %vm1277 = vcmask 57344
        %1278 = vst.msk [vmem:[#allocation3 + $0x28] sm:$0x1] %vm1277, %v1263
        %v1279 = vld [vmem:[#allocation3] sm:$0xff]
        %v1280 = vld [vmem:[#allocation3 + $0x10] sm:$0xff]
        %v1281 = vld [vmem:[#allocation3 + $0x20] sm:$0x3]
        %v1282 = vpack.c.bf16 %v1280, %v1279
        %v1283 = vld [vmem:[%s5] sm:$0xf]
        %v1284 = vld [vmem:[%s5 + $0x4] sm:$0xf]
        %v1285 = vld [vmem:[%s5 + $0x8] sm:$0xf]
        %v1286 = vld [vmem:[%s5 + $0xc] sm:$0xf]
        %v1287 = vld [vmem:[%s5 + $0x10] sm:$0xf]
        %v1288 = vld [vmem:[%s5 + $0x14] sm:$0xf]
        %v1289 = vld [vmem:[%s5 + $0x18] sm:$0xf]
        %v1290 = vld [vmem:[%s5 + $0x1c] sm:$0xf]
        %v1291 = vld [vmem:[%s5 + $0x20] sm:$0xf]
        %v1292 = vld [vmem:[%s5 + $0x24] sm:$0xf]
        %v1293 = vld [vmem:[%s5 + $0x28] sm:$0xf]
        %v1294 = vld [vmem:[%s5 + $0x2c] sm:$0xf]
        %v1295 = vld [vmem:[%s5 + $0x30] sm:$0xf]
        %v1296 = vld [vmem:[%s5 + $0x34] sm:$0xf]
        %v1297 = vld [vmem:[%s5 + $0x38] sm:$0xf]
        %v1298 = vld [vmem:[%s5 + $0x3c] sm:$0xf]
        %v1299 = vpack.c.bf16 %v1281, %v1281
        %s1300 = scalar_lea.vmem %s5, 192
        %v1301 = vld [vmem:[%s1300] sm:$0xf]
        %v1302 = vld [vmem:[%s1300 + $0x4] sm:$0xf]
        %v1303 = vld [vmem:[%s1300 + $0x8] sm:$0xf]
        %v1304 = vld [vmem:[%s1300 + $0xc] sm:$0xf]
        %v1305 = vld [vmem:[%s1300 + $0x10] sm:$0xf]
        %v1306 = vld [vmem:[%s1300 + $0x14] sm:$0xf]
        %v1307 = vld [vmem:[%s1300 + $0x18] sm:$0xf]
        %v1308 = vld [vmem:[%s1300 + $0x1c] sm:$0xf]
        %v1309 = vld [vmem:[%s1300 + $0x20] sm:$0xf]
        %v1310 = vld [vmem:[%s1300 + $0x24] sm:$0xf]
        %v1311 = vld [vmem:[%s1300 + $0x28] sm:$0xf]
        %v1312 = vld [vmem:[%s1300 + $0x2c] sm:$0xf]
        %v1313 = vld [vmem:[%s1300 + $0x30] sm:$0xf]
        %v1314 = vld [vmem:[%s1300 + $0x34] sm:$0xf]
        %v1315 = vld [vmem:[%s1300 + $0x38] sm:$0xf]
        %v1316 = vld [vmem:[%s1300 + $0x3c] sm:$0xf]
        %v1318 = vshrl.u32 %v1282, 16
        %v1320 = vshll.u32 %v1282, 16
        %v1322 = vrot.slane %v1320, 1
        %v1323 = vor.u32 %v1318, %v1322
        %v1325 = vshll.u32 %v1299, 16
        %v1327 = vrot.slane %v1325, 1
        %v1328 = vsel %vm492, %v1323, %v1327
        %v1346 = vunpack.c.l.b16 %v1301
        %v1347 = vunpack.c.l.b16 %v1302
        %v1348 = vunpack.c.l.b16 %v1303
        %v1349 = vunpack.c.l.b16 %v1304
        %v1350 = vunpack.c.l.b16 %v1305
        %v1351 = vunpack.c.l.b16 %v1306
        %v1352 = vunpack.c.l.b16 %v1307
        %v1353 = vunpack.c.l.b16 %v1308
        %v1354 = vunpack.c.l.b16 %v1309
        %v1355 = vunpack.c.l.b16 %v1310
        %v1356 = vunpack.c.l.b16 %v1311
        %v1357 = vunpack.c.l.b16 %v1312
        %v1358 = vunpack.c.l.b16 %v1313
        %v1359 = vunpack.c.l.b16 %v1314
        %v1360 = vunpack.c.l.b16 %v1315
        %v1361 = vunpack.c.l.b16 %v1316
        %v1362 = vpack.c.b16 %v1347, %v1346
        %v1363 = vpack.c.b16 %v1349, %v1348
        %v1364 = vpack.c.b16 %v1351, %v1350
        %v1365 = vpack.c.b16 %v1353, %v1352
        %v1366 = vpack.c.b16 %v1355, %v1354
        %v1367 = vpack.c.b16 %v1357, %v1356
        %v1368 = vpack.c.b16 %v1359, %v1358
        %v1369 = vpack.c.b16 %v1361, %v1360
        %1378 = vmatprep.subr.bf16.mxu0 0
        %1379 = vmatpush1.bf16.msra.mxu0 %v1362
        %1380 = vmatprep.subr.bf16.mxu0 0
        %1381 = vmatpush1.bf16.msra.mxu0 %v1363
        %1382 = vmatprep.subr.bf16.mxu0 0
        %1383 = vmatpush1.bf16.msra.mxu0 %v1364
        %1384 = vmatprep.subr.bf16.mxu0 0
        %1385 = vmatpush1.bf16.msra.mxu0 %v1365
        %1386 = vmatprep.subr.bf16.mxu0 0
        %1387 = vmatpush1.bf16.msra.mxu0 %v1366
        %1388 = vmatprep.subr.bf16.mxu0 0
        %1389 = vmatpush1.bf16.msra.mxu0 %v1367
        %1390 = vmatprep.subr.bf16.mxu0 0
        %1391 = vmatpush1.bf16.msra.mxu0 %v1368
        %1392 = vmatprep.subr.bf16.mxu0 0
        %1393 = vmatpush1.bf16.msra.mxu0 %v1369
        %1394 = vmatprep.subr.bf16.mxu0 0
        %1395 = vmatpush1.bf16.msra.mxu0 0
        %1396 = vmatprep.subr.bf16.mxu0 0
        %1397 = vmatpush1.bf16.msra.mxu0 0
        %1398 = vmatprep.subr.bf16.mxu0 0
        %1399 = vmatpush1.bf16.msra.mxu0 0
        %1400 = vmatprep.subr.bf16.mxu0 0
        %1401 = vmatpush1.bf16.msra.mxu0 0
        %1402 = vmatprep.subr.bf16.mxu0 0
        %1403 = vmatpush1.bf16.msra.mxu0 0
        %1404 = vmatprep.subr.bf16.mxu0 0
        %1405 = vmatpush1.bf16.msra.mxu0 0
        %1406 = vmatprep.subr.bf16.mxu0 0
        %1407 = vmatpush1.bf16.msra.mxu0 0
        %1408 = vmatprep.subr.bf16.mxu0 0
        %1409 = vmatpush1.bf16.msra.mxu0 0
        %1410 = vmatprep.mubr.bf16.mxu0 0
        %1411 = vmatmul.mubr.bf16.gmra.mrb[0].mxu0 %v1328
        %v1412 = vpop.f32.mrb[0].mxu0
        %v1413 = vadd.f32 0.0, %v1412
        %v1414 = vpop.f32.mrb[0].mxu0
        %v1415 = vpop.f32.mrb[0].mxu0
        %v1416 = vadd.f32 0.0, %v1415
        %v1417 = vpop.f32.mrb[0].mxu0
        %1418 = vdwg.mxu0
        %v1435 = vunpack.c.l.b16 %v1283
        %v1436 = vunpack.c.l.b16 %v1284
        %v1437 = vunpack.c.l.b16 %v1285
        %v1438 = vunpack.c.l.b16 %v1286
        %v1439 = vunpack.c.l.b16 %v1287
        %v1440 = vunpack.c.l.b16 %v1288
        %v1441 = vunpack.c.l.b16 %v1289
        %v1442 = vunpack.c.l.b16 %v1290
        %v1443 = vunpack.c.l.b16 %v1291
        %v1444 = vunpack.c.l.b16 %v1292
        %v1445 = vunpack.c.l.b16 %v1293
        %v1446 = vunpack.c.l.b16 %v1294
        %v1447 = vunpack.c.l.b16 %v1295
        %v1448 = vunpack.c.l.b16 %v1296
        %v1449 = vunpack.c.l.b16 %v1297
        %v1450 = vunpack.c.l.b16 %v1298
        %v1451 = vpack.c.b16 %v1436, %v1435
        %v1452 = vpack.c.b16 %v1438, %v1437
        %v1453 = vpack.c.b16 %v1440, %v1439
        %v1454 = vpack.c.b16 %v1442, %v1441
        %v1455 = vpack.c.b16 %v1444, %v1443
        %v1456 = vpack.c.b16 %v1446, %v1445
        %v1457 = vpack.c.b16 %v1448, %v1447
        %v1458 = vpack.c.b16 %v1450, %v1449
        %1467 = vmatprep.subr.bf16.mxu0 0
        %1468 = vmatpush1.bf16.msra.mxu0 %v1451
        %1469 = vmatprep.subr.bf16.mxu0 0
        %1470 = vmatpush1.bf16.msra.mxu0 %v1452
        %1471 = vmatprep.subr.bf16.mxu0 0
        %1472 = vmatpush1.bf16.msra.mxu0 %v1453
        %1473 = vmatprep.subr.bf16.mxu0 0
        %1474 = vmatpush1.bf16.msra.mxu0 %v1454
        %1475 = vmatprep.subr.bf16.mxu0 0
        %1476 = vmatpush1.bf16.msra.mxu0 %v1455
        %1477 = vmatprep.subr.bf16.mxu0 0
        %1478 = vmatpush1.bf16.msra.mxu0 %v1456
        %1479 = vmatprep.subr.bf16.mxu0 0
        %1480 = vmatpush1.bf16.msra.mxu0 %v1457
        %1481 = vmatprep.subr.bf16.mxu0 0
        %1482 = vmatpush1.bf16.msra.mxu0 %v1458
        %1483 = vmatprep.subr.bf16.mxu0 0
        %1484 = vmatpush1.bf16.msra.mxu0 0
        %1485 = vmatprep.subr.bf16.mxu0 0
        %1486 = vmatpush1.bf16.msra.mxu0 0
        %1487 = vmatprep.subr.bf16.mxu0 0
        %1488 = vmatpush1.bf16.msra.mxu0 0
        %1489 = vmatprep.subr.bf16.mxu0 0
        %1490 = vmatpush1.bf16.msra.mxu0 0
        %1491 = vmatprep.subr.bf16.mxu0 0
        %1492 = vmatpush1.bf16.msra.mxu0 0
        %1493 = vmatprep.subr.bf16.mxu0 0
        %1494 = vmatpush1.bf16.msra.mxu0 0
        %1495 = vmatprep.subr.bf16.mxu0 0
        %1496 = vmatpush1.bf16.msra.mxu0 0
        %1497 = vmatprep.subr.bf16.mxu0 0
        %1498 = vmatpush1.bf16.msra.mxu0 0
        %1499 = vmatprep.mubr.bf16.mxu0 0
        %1500 = vmatmul.mubr.bf16.gmra.mrb[0].mxu0 %v1282
        %v1501 = vpop.f32.mrb[0].mxu0
        %v1502 = vadd.f32 %v1413, %v1501
        %v1503 = vpop.f32.mrb[0].mxu0
        %v1504 = vpop.f32.mrb[0].mxu0
        %v1505 = vadd.f32 %v1416, %v1504
        %v1506 = vpop.f32.mrb[0].mxu0
        %1507 = vdwg.mxu0
        %s1508 = scalar_lea.vmem %s5, 384
        %v1509 = vld [vmem:[%s1508] sm:$0xf]
        %v1510 = vld [vmem:[%s1508 + $0x4] sm:$0xf]
        %v1511 = vld [vmem:[%s1508 + $0x8] sm:$0xf]
        %v1512 = vld [vmem:[%s1508 + $0xc] sm:$0xf]
        %v1513 = vld [vmem:[%s1508 + $0x10] sm:$0xf]
        %v1514 = vld [vmem:[%s1508 + $0x14] sm:$0xf]
        %v1515 = vld [vmem:[%s1508 + $0x18] sm:$0xf]
        %v1516 = vld [vmem:[%s1508 + $0x1c] sm:$0xf]
        %v1517 = vld [vmem:[%s1508 + $0x20] sm:$0xf]
        %v1518 = vld [vmem:[%s1508 + $0x24] sm:$0xf]
        %v1519 = vld [vmem:[%s1508 + $0x28] sm:$0xf]
        %v1520 = vld [vmem:[%s1508 + $0x2c] sm:$0xf]
        %v1521 = vld [vmem:[%s1508 + $0x30] sm:$0xf]
        %v1522 = vld [vmem:[%s1508 + $0x34] sm:$0xf]
        %v1523 = vld [vmem:[%s1508 + $0x38] sm:$0xf]
        %v1524 = vld [vmem:[%s1508 + $0x3c] sm:$0xf]
        %v1527 = vrot.slane %v1282, 1
        %v1528 = vrot.slane %v1299, 1
        %v1529 = vsel %vm652, %v1527, %v1528
        %v1547 = vunpack.c.l.b16 %v1509
        %v1548 = vunpack.c.l.b16 %v1510
        %v1549 = vunpack.c.l.b16 %v1511
        %v1550 = vunpack.c.l.b16 %v1512
        %v1551 = vunpack.c.l.b16 %v1513
        %v1552 = vunpack.c.l.b16 %v1514
        %v1553 = vunpack.c.l.b16 %v1515
        %v1554 = vunpack.c.l.b16 %v1516
        %v1555 = vunpack.c.l.b16 %v1517
        %v1556 = vunpack.c.l.b16 %v1518
        %v1557 = vunpack.c.l.b16 %v1519
        %v1558 = vunpack.c.l.b16 %v1520
        %v1559 = vunpack.c.l.b16 %v1521
        %v1560 = vunpack.c.l.b16 %v1522
        %v1561 = vunpack.c.l.b16 %v1523
        %v1562 = vunpack.c.l.b16 %v1524
        %v1563 = vpack.c.b16 %v1548, %v1547
        %v1564 = vpack.c.b16 %v1550, %v1549
        %v1565 = vpack.c.b16 %v1552, %v1551
        %v1566 = vpack.c.b16 %v1554, %v1553
        %v1567 = vpack.c.b16 %v1556, %v1555
        %v1568 = vpack.c.b16 %v1558, %v1557
        %v1569 = vpack.c.b16 %v1560, %v1559
        %v1570 = vpack.c.b16 %v1562, %v1561
        %1579 = vmatprep.subr.bf16.mxu0 0
        %1580 = vmatpush1.bf16.msra.mxu0 %v1563
        %1581 = vmatprep.subr.bf16.mxu0 0
        %1582 = vmatpush1.bf16.msra.mxu0 %v1564
        %1583 = vmatprep.subr.bf16.mxu0 0
        %1584 = vmatpush1.bf16.msra.mxu0 %v1565
        %1585 = vmatprep.subr.bf16.mxu0 0
        %1586 = vmatpush1.bf16.msra.mxu0 %v1566
        %1587 = vmatprep.subr.bf16.mxu0 0
        %1588 = vmatpush1.bf16.msra.mxu0 %v1567
        %1589 = vmatprep.subr.bf16.mxu0 0
        %1590 = vmatpush1.bf16.msra.mxu0 %v1568
        %1591 = vmatprep.subr.bf16.mxu0 0
        %1592 = vmatpush1.bf16.msra.mxu0 %v1569
        %1593 = vmatprep.subr.bf16.mxu0 0
        %1594 = vmatpush1.bf16.msra.mxu0 %v1570
        %1595 = vmatprep.subr.bf16.mxu0 0
        %1596 = vmatpush1.bf16.msra.mxu0 0
        %1597 = vmatprep.subr.bf16.mxu0 0
        %1598 = vmatpush1.bf16.msra.mxu0 0
        %1599 = vmatprep.subr.bf16.mxu0 0
        %1600 = vmatpush1.bf16.msra.mxu0 0
        %1601 = vmatprep.subr.bf16.mxu0 0
        %1602 = vmatpush1.bf16.msra.mxu0 0
        %1603 = vmatprep.subr.bf16.mxu0 0
        %1604 = vmatpush1.bf16.msra.mxu0 0
        %1605 = vmatprep.subr.bf16.mxu0 0
        %1606 = vmatpush1.bf16.msra.mxu0 0
        %1607 = vmatprep.subr.bf16.mxu0 0
        %1608 = vmatpush1.bf16.msra.mxu0 0
        %1609 = vmatprep.subr.bf16.mxu0 0
        %1610 = vmatpush1.bf16.msra.mxu0 0
        %1611 = vmatprep.mubr.bf16.mxu0 0
        %1612 = vmatmul.mubr.bf16.gmra.mrb[0].mxu0 %v1529
        %v1613 = vpop.f32.mrb[0].mxu0
        %v1614 = vadd.f32 0.0, %v1613
        %v1615 = vpop.f32.mrb[0].mxu0
        %v1616 = vpop.f32.mrb[0].mxu0
        %v1617 = vadd.f32 0.0, %v1616
        %v1618 = vpop.f32.mrb[0].mxu0
        %1619 = vdwg.mxu0
        %v1620 = vadd.f32 %v1502, %v1614
        %v1621 = vadd.f32 %v1505, %v1617
        %v1622 = vld [vmem:[#allocation3] sm:$0xff]
        %v1623 = vld [vmem:[#allocation3 + $0x8] sm:$0xff]
        %v1624 = vld [vmem:[#allocation3 + $0x10] sm:$0xff]
        %v1625 = vld [vmem:[#allocation3 + $0x18] sm:$0xff]
        %v1626 = vld [vmem:[#allocation3 + $0x20] sm:$0x3]
        %v1627 = vld [vmem:[#allocation3 + $0x28] sm:$0x3]
        %v1628 = vpack.c.bf16 %v1624, %v1622
        %v1629 = vpack.c.bf16 %v1625, %v1623
        %s1630 = scalar_lea.vmem %s5, 64
        %v1631 = vld [vmem:[%s1630] sm:$0xf]
        %v1632 = vld [vmem:[%s1630 + $0x4] sm:$0xf]
        %v1633 = vld [vmem:[%s1630 + $0x8] sm:$0xf]
        %v1634 = vld [vmem:[%s1630 + $0xc] sm:$0xf]
        %v1635 = vld [vmem:[%s1630 + $0x10] sm:$0xf]
        %v1636 = vld [vmem:[%s1630 + $0x14] sm:$0xf]
        %v1637 = vld [vmem:[%s1630 + $0x18] sm:$0xf]
        %v1638 = vld [vmem:[%s1630 + $0x1c] sm:$0xf]
        %v1639 = vld [vmem:[%s1630 + $0x20] sm:$0xf]
        %v1640 = vld [vmem:[%s1630 + $0x24] sm:$0xf]
        %v1641 = vld [vmem:[%s1630 + $0x28] sm:$0xf]
        %v1642 = vld [vmem:[%s1630 + $0x2c] sm:$0xf]
        %v1643 = vld [vmem:[%s1630 + $0x30] sm:$0xf]
        %v1644 = vld [vmem:[%s1630 + $0x34] sm:$0xf]
        %v1645 = vld [vmem:[%s1630 + $0x38] sm:$0xf]
        %v1646 = vld [vmem:[%s1630 + $0x3c] sm:$0xf]
        %1649 = vrot.lane.b32.xlu0 %v1628, 120
        %v1650 = vpop.permute.xlu0 %1649
        %1651 = vrot.lane.b32.xlu0 %v1629, 120
        %v1652 = vpop.permute.xlu0 %1651
        %vm1653 = vcmask 982016
        %v1654 = vsel %vm1653, %v1650, %v1652
        %v1672 = vunpack.c.l.b16 %v1631
        %v1673 = vunpack.c.l.b16 %v1632
        %v1674 = vunpack.c.l.b16 %v1633
        %v1675 = vunpack.c.l.b16 %v1634
        %v1676 = vunpack.c.l.b16 %v1635
        %v1677 = vunpack.c.l.b16 %v1636
        %v1678 = vunpack.c.l.b16 %v1637
        %v1679 = vunpack.c.l.b16 %v1638
        %v1680 = vunpack.c.l.b16 %v1639
        %v1681 = vunpack.c.l.b16 %v1640
        %v1682 = vunpack.c.l.b16 %v1641
        %v1683 = vunpack.c.l.b16 %v1642
        %v1684 = vunpack.c.l.b16 %v1643
        %v1685 = vunpack.c.l.b16 %v1644
        %v1686 = vunpack.c.l.b16 %v1645
        %v1687 = vunpack.c.l.b16 %v1646
        %v1688 = vpack.c.b16 %v1673, %v1672
        %v1689 = vpack.c.b16 %v1675, %v1674
        %v1690 = vpack.c.b16 %v1677, %v1676
        %v1691 = vpack.c.b16 %v1679, %v1678
        %v1692 = vpack.c.b16 %v1681, %v1680
        %v1693 = vpack.c.b16 %v1683, %v1682
        %v1694 = vpack.c.b16 %v1685, %v1684
        %v1695 = vpack.c.b16 %v1687, %v1686
        %1704 = vmatprep.subr.bf16.mxu0 0
        %1705 = vmatpush1.bf16.msra.mxu0 %v1688
        %1706 = vmatprep.subr.bf16.mxu0 0
        %1707 = vmatpush1.bf16.msra.mxu0 %v1689
        %1708 = vmatprep.subr.bf16.mxu0 0
        %1709 = vmatpush1.bf16.msra.mxu0 %v1690
        %1710 = vmatprep.subr.bf16.mxu0 0
        %1711 = vmatpush1.bf16.msra.mxu0 %v1691
        %1712 = vmatprep.subr.bf16.mxu0 0
        %1713 = vmatpush1.bf16.msra.mxu0 %v1692
        %1714 = vmatprep.subr.bf16.mxu0 0
        %1715 = vmatpush1.bf16.msra.mxu0 %v1693
        %1716 = vmatprep.subr.bf16.mxu0 0
        %1717 = vmatpush1.bf16.msra.mxu0 %v1694
        %1718 = vmatprep.subr.bf16.mxu0 0
        %1719 = vmatpush1.bf16.msra.mxu0 %v1695
        %1720 = vmatprep.subr.bf16.mxu0 0
        %1721 = vmatpush1.bf16.msra.mxu0 0
        %1722 = vmatprep.subr.bf16.mxu0 0
        %1723 = vmatpush1.bf16.msra.mxu0 0
        %1724 = vmatprep.subr.bf16.mxu0 0
        %1725 = vmatpush1.bf16.msra.mxu0 0
        %1726 = vmatprep.subr.bf16.mxu0 0
        %1727 = vmatpush1.bf16.msra.mxu0 0
        %1728 = vmatprep.subr.bf16.mxu0 0
        %1729 = vmatpush1.bf16.msra.mxu0 0
        %1730 = vmatprep.subr.bf16.mxu0 0
        %1731 = vmatpush1.bf16.msra.mxu0 0
        %1732 = vmatprep.subr.bf16.mxu0 0
        %1733 = vmatpush1.bf16.msra.mxu0 0
        %1734 = vmatprep.subr.bf16.mxu0 0
        %1735 = vmatpush1.bf16.msra.mxu0 0
        %1736 = vmatprep.mubr.bf16.mxu0 0
        %1737 = vmatmul.mubr.bf16.gmra.mrb[0].mxu0 %v1654
        %v1738 = vpop.f32.mrb[0].mxu0
        %v1739 = vadd.f32 0.0, %v1738
        %v1740 = vpop.f32.mrb[0].mxu0
        %v1741 = vpop.f32.mrb[0].mxu0
        %v1742 = vadd.f32 0.0, %v1741
        %v1743 = vpop.f32.mrb[0].mxu0
        %1744 = vdwg.mxu0
        %v1745 = vadd.f32 %v1620, %v1739
        %v1746 = vadd.f32 %v1621, %v1742
        %v1747 = vpack.c.bf16 %v1626, %v1626
        %v1748 = vpack.c.bf16 %v1627, %v1627
        %s1749 = scalar_lea.vmem %s5, 256
        %v1750 = vld [vmem:[%s1749] sm:$0xf]
        %v1751 = vld [vmem:[%s1749 + $0x4] sm:$0xf]
        %v1752 = vld [vmem:[%s1749 + $0x8] sm:$0xf]
        %v1753 = vld [vmem:[%s1749 + $0xc] sm:$0xf]
        %v1754 = vld [vmem:[%s1749 + $0x10] sm:$0xf]
        %v1755 = vld [vmem:[%s1749 + $0x14] sm:$0xf]
        %v1756 = vld [vmem:[%s1749 + $0x18] sm:$0xf]
        %v1757 = vld [vmem:[%s1749 + $0x1c] sm:$0xf]
        %v1758 = vld [vmem:[%s1749 + $0x20] sm:$0xf]
        %v1759 = vld [vmem:[%s1749 + $0x24] sm:$0xf]
        %v1760 = vld [vmem:[%s1749 + $0x28] sm:$0xf]
        %v1761 = vld [vmem:[%s1749 + $0x2c] sm:$0xf]
        %v1762 = vld [vmem:[%s1749 + $0x30] sm:$0xf]
        %v1763 = vld [vmem:[%s1749 + $0x34] sm:$0xf]
        %v1764 = vld [vmem:[%s1749 + $0x38] sm:$0xf]
        %v1765 = vld [vmem:[%s1749 + $0x3c] sm:$0xf]
        %v1767 = vshrl.u32 %v1628, 16
        %v1769 = vshll.u32 %v1628, 16
        %v1771 = vrot.slane %v1769, 1
        %v1772 = vor.u32 %v1767, %v1771
        %v1774 = vshll.u32 %v1747, 16
        %v1776 = vrot.slane %v1774, 1
        %v1777 = vsel %vm492, %v1772, %v1776
        %v1779 = vshrl.u32 %v1629, 16
        %v1781 = vshll.u32 %v1629, 16
        %v1783 = vrot.slane %v1781, 1
        %v1784 = vor.u32 %v1779, %v1783
        %v1786 = vshll.u32 %v1748, 16
        %v1788 = vrot.slane %v1786, 1
        %v1789 = vsel %vm492, %v1784, %v1788
        %1790 = vrot.lane.b32.xlu0 %v1777, 120
        %v1791 = vpop.permute.xlu0 %1790
        %1792 = vrot.lane.b32.xlu0 %v1789, 120
        %v1793 = vpop.permute.xlu0 %1792
        %v1794 = vsel %vm1653, %v1791, %v1793
        %v1812 = vunpack.c.l.b16 %v1750
        %v1813 = vunpack.c.l.b16 %v1751
        %v1814 = vunpack.c.l.b16 %v1752
        %v1815 = vunpack.c.l.b16 %v1753
        %v1816 = vunpack.c.l.b16 %v1754
        %v1817 = vunpack.c.l.b16 %v1755
        %v1818 = vunpack.c.l.b16 %v1756
        %v1819 = vunpack.c.l.b16 %v1757
        %v1820 = vunpack.c.l.b16 %v1758
        %v1821 = vunpack.c.l.b16 %v1759
        %v1822 = vunpack.c.l.b16 %v1760
        %v1823 = vunpack.c.l.b16 %v1761
        %v1824 = vunpack.c.l.b16 %v1762
        %v1825 = vunpack.c.l.b16 %v1763
        %v1826 = vunpack.c.l.b16 %v1764
        %v1827 = vunpack.c.l.b16 %v1765
        %v1828 = vpack.c.b16 %v1813, %v1812
        %v1829 = vpack.c.b16 %v1815, %v1814
        %v1830 = vpack.c.b16 %v1817, %v1816
        %v1831 = vpack.c.b16 %v1819, %v1818
        %v1832 = vpack.c.b16 %v1821, %v1820
        %v1833 = vpack.c.b16 %v1823, %v1822
        %v1834 = vpack.c.b16 %v1825, %v1824
        %v1835 = vpack.c.b16 %v1827, %v1826
        %1844 = vmatprep.subr.bf16.mxu0 0
        %1845 = vmatpush1.bf16.msra.mxu0 %v1828
        %1846 = vmatprep.subr.bf16.mxu0 0
        %1847 = vmatpush1.bf16.msra.mxu0 %v1829
        %1848 = vmatprep.subr.bf16.mxu0 0
        %1849 = vmatpush1.bf16.msra.mxu0 %v1830
        %1850 = vmatprep.subr.bf16.mxu0 0
        %1851 = vmatpush1.bf16.msra.mxu0 %v1831
        %1852 = vmatprep.subr.bf16.mxu0 0
        %1853 = vmatpush1.bf16.msra.mxu0 %v1832
        %1854 = vmatprep.subr.bf16.mxu0 0
        %1855 = vmatpush1.bf16.msra.mxu0 %v1833
        %1856 = vmatprep.subr.bf16.mxu0 0
        %1857 = vmatpush1.bf16.msra.mxu0 %v1834
        %1858 = vmatprep.subr.bf16.mxu0 0
        %1859 = vmatpush1.bf16.msra.mxu0 %v1835
        %1860 = vmatprep.subr.bf16.mxu0 0
        %1861 = vmatpush1.bf16.msra.mxu0 0
        %1862 = vmatprep.subr.bf16.mxu0 0
        %1863 = vmatpush1.bf16.msra.mxu0 0
        %1864 = vmatprep.subr.bf16.mxu0 0
        %1865 = vmatpush1.bf16.msra.mxu0 0
        %1866 = vmatprep.subr.bf16.mxu0 0
        %1867 = vmatpush1.bf16.msra.mxu0 0
        %1868 = vmatprep.subr.bf16.mxu0 0
        %1869 = vmatpush1.bf16.msra.mxu0 0
        %1870 = vmatprep.subr.bf16.mxu0 0
        %1871 = vmatpush1.bf16.msra.mxu0 0
        %1872 = vmatprep.subr.bf16.mxu0 0
        %1873 = vmatpush1.bf16.msra.mxu0 0
        %1874 = vmatprep.subr.bf16.mxu0 0
        %1875 = vmatpush1.bf16.msra.mxu0 0
        %1876 = vmatprep.mubr.bf16.mxu0 0
        %1877 = vmatmul.mubr.bf16.gmra.mrb[0].mxu0 %v1794
        %v1878 = vpop.f32.mrb[0].mxu0
        %v1879 = vadd.f32 0.0, %v1878
        %v1880 = vpop.f32.mrb[0].mxu0
        %v1881 = vpop.f32.mrb[0].mxu0
        %v1882 = vadd.f32 0.0, %v1881
        %v1883 = vpop.f32.mrb[0].mxu0
        %1884 = vdwg.mxu0
        %v1885 = vadd.f32 %v1745, %v1879
        %v1886 = vadd.f32 %v1746, %v1882
        %s1887 = scalar_lea.vmem %s5, 448
        %v1888 = vld [vmem:[%s1887] sm:$0xf]
        %v1889 = vld [vmem:[%s1887 + $0x4] sm:$0xf]
        %v1890 = vld [vmem:[%s1887 + $0x8] sm:$0xf]
        %v1891 = vld [vmem:[%s1887 + $0xc] sm:$0xf]
        %v1892 = vld [vmem:[%s1887 + $0x10] sm:$0xf]
        %v1893 = vld [vmem:[%s1887 + $0x14] sm:$0xf]
        %v1894 = vld [vmem:[%s1887 + $0x18] sm:$0xf]
        %v1895 = vld [vmem:[%s1887 + $0x1c] sm:$0xf]
        %v1896 = vld [vmem:[%s1887 + $0x20] sm:$0xf]
        %v1897 = vld [vmem:[%s1887 + $0x24] sm:$0xf]
        %v1898 = vld [vmem:[%s1887 + $0x28] sm:$0xf]
        %v1899 = vld [vmem:[%s1887 + $0x2c] sm:$0xf]
        %v1900 = vld [vmem:[%s1887 + $0x30] sm:$0xf]
        %v1901 = vld [vmem:[%s1887 + $0x34] sm:$0xf]
        %v1902 = vld [vmem:[%s1887 + $0x38] sm:$0xf]
        %v1903 = vld [vmem:[%s1887 + $0x3c] sm:$0xf]
        %v1906 = vrot.slane %v1628, 1
        %v1907 = vrot.slane %v1747, 1
        %v1908 = vsel %vm652, %v1906, %v1907
        %v1909 = vrot.slane %v1629, 1
        %v1910 = vrot.slane %v1748, 1
        %v1911 = vsel %vm652, %v1909, %v1910
        %1912 = vrot.lane.b32.xlu0 %v1908, 120
        %v1913 = vpop.permute.xlu0 %1912
        %1914 = vrot.lane.b32.xlu0 %v1911, 120
        %v1915 = vpop.permute.xlu0 %1914
        %v1916 = vsel %vm1653, %v1913, %v1915
        %v1934 = vunpack.c.l.b16 %v1888
        %v1935 = vunpack.c.l.b16 %v1889
        %v1936 = vunpack.c.l.b16 %v1890
        %v1937 = vunpack.c.l.b16 %v1891
        %v1938 = vunpack.c.l.b16 %v1892
        %v1939 = vunpack.c.l.b16 %v1893
        %v1940 = vunpack.c.l.b16 %v1894
        %v1941 = vunpack.c.l.b16 %v1895
        %v1942 = vunpack.c.l.b16 %v1896
        %v1943 = vunpack.c.l.b16 %v1897
        %v1944 = vunpack.c.l.b16 %v1898
        %v1945 = vunpack.c.l.b16 %v1899
        %v1946 = vunpack.c.l.b16 %v1900
        %v1947 = vunpack.c.l.b16 %v1901
        %v1948 = vunpack.c.l.b16 %v1902
        %v1949 = vunpack.c.l.b16 %v1903
        %v1950 = vpack.c.b16 %v1935, %v1934
        %v1951 = vpack.c.b16 %v1937, %v1936
        %v1952 = vpack.c.b16 %v1939, %v1938
        %v1953 = vpack.c.b16 %v1941, %v1940
        %v1954 = vpack.c.b16 %v1943, %v1942
        %v1955 = vpack.c.b16 %v1945, %v1944
        %v1956 = vpack.c.b16 %v1947, %v1946
        %v1957 = vpack.c.b16 %v1949, %v1948
        %1966 = vmatprep.subr.bf16.mxu0 0
        %1967 = vmatpush1.bf16.msra.mxu0 %v1950
        %1968 = vmatprep.subr.bf16.mxu0 0
        %1969 = vmatpush1.bf16.msra.mxu0 %v1951
        %1970 = vmatprep.subr.bf16.mxu0 0
        %1971 = vmatpush1.bf16.msra.mxu0 %v1952
        %1972 = vmatprep.subr.bf16.mxu0 0
        %1973 = vmatpush1.bf16.msra.mxu0 %v1953
        %1974 = vmatprep.subr.bf16.mxu0 0
        %1975 = vmatpush1.bf16.msra.mxu0 %v1954
        %1976 = vmatprep.subr.bf16.mxu0 0
        %1977 = vmatpush1.bf16.msra.mxu0 %v1955
        %1978 = vmatprep.subr.bf16.mxu0 0
        %1979 = vmatpush1.bf16.msra.mxu0 %v1956
        %1980 = vmatprep.subr.bf16.mxu0 0
        %1981 = vmatpush1.bf16.msra.mxu0 %v1957
        %1982 = vmatprep.subr.bf16.mxu0 0
        %1983 = vmatpush1.bf16.msra.mxu0 0
        %1984 = vmatprep.subr.bf16.mxu0 0
        %1985 = vmatpush1.bf16.msra.mxu0 0
        %1986 = vmatprep.subr.bf16.mxu0 0
        %1987 = vmatpush1.bf16.msra.mxu0 0
        %1988 = vmatprep.subr.bf16.mxu0 0
        %1989 = vmatpush1.bf16.msra.mxu0 0
        %1990 = vmatprep.subr.bf16.mxu0 0
        %1991 = vmatpush1.bf16.msra.mxu0 0
        %1992 = vmatprep.subr.bf16.mxu0 0
        %1993 = vmatpush1.bf16.msra.mxu0 0
        %1994 = vmatprep.subr.bf16.mxu0 0
        %1995 = vmatpush1.bf16.msra.mxu0 0
        %1996 = vmatprep.subr.bf16.mxu0 0
        %1997 = vmatpush1.bf16.msra.mxu0 0
        %1998 = vmatprep.mubr.bf16.mxu0 0
        %1999 = vmatmul.mubr.bf16.gmra.mrb[0].mxu0 %v1916
        %v2000 = vpop.f32.mrb[0].mxu0
        %v2001 = vadd.f32 0.0, %v2000
        %v2002 = vpop.f32.mrb[0].mxu0
        %v2003 = vpop.f32.mrb[0].mxu0
        %v2004 = vadd.f32 0.0, %v2003
        %v2005 = vpop.f32.mrb[0].mxu0
        %2006 = vdwg.mxu0
        %v2007 = vadd.f32 %v1885, %v2001
        %v2008 = vadd.f32 %v1886, %v2004
        %s2009 = scalar_lea.vmem %s5, 128
        %v2010 = vld [vmem:[%s2009] sm:$0xf]
        %v2011 = vld [vmem:[%s2009 + $0x4] sm:$0xf]
        %v2012 = vld [vmem:[%s2009 + $0x8] sm:$0xf]
        %v2013 = vld [vmem:[%s2009 + $0xc] sm:$0xf]
        %v2014 = vld [vmem:[%s2009 + $0x10] sm:$0xf]
        %v2015 = vld [vmem:[%s2009 + $0x14] sm:$0xf]
        %v2016 = vld [vmem:[%s2009 + $0x18] sm:$0xf]
        %v2017 = vld [vmem:[%s2009 + $0x1c] sm:$0xf]
        %v2018 = vld [vmem:[%s2009 + $0x20] sm:$0xf]
        %v2019 = vld [vmem:[%s2009 + $0x24] sm:$0xf]
        %v2020 = vld [vmem:[%s2009 + $0x28] sm:$0xf]
        %v2021 = vld [vmem:[%s2009 + $0x2c] sm:$0xf]
        %v2022 = vld [vmem:[%s2009 + $0x30] sm:$0xf]
        %v2023 = vld [vmem:[%s2009 + $0x34] sm:$0xf]
        %v2024 = vld [vmem:[%s2009 + $0x38] sm:$0xf]
        %v2025 = vld [vmem:[%s2009 + $0x3c] sm:$0xf]
        %2026 = vrot.lane.b32.xlu0 %v1628, 112
        %v2027 = vpop.permute.xlu0 %2026
        %2028 = vrot.lane.b32.xlu0 %v1629, 112
        %v2029 = vpop.permute.xlu0 %2028
        %vm2030 = vcmask 916480
        %v2031 = vsel %vm2030, %v2027, %v2029
        %v2049 = vunpack.c.l.b16 %v2010
        %v2050 = vunpack.c.l.b16 %v2011
        %v2051 = vunpack.c.l.b16 %v2012
        %v2052 = vunpack.c.l.b16 %v2013
        %v2053 = vunpack.c.l.b16 %v2014
        %v2054 = vunpack.c.l.b16 %v2015
        %v2055 = vunpack.c.l.b16 %v2016
        %v2056 = vunpack.c.l.b16 %v2017
        %v2057 = vunpack.c.l.b16 %v2018
        %v2058 = vunpack.c.l.b16 %v2019
        %v2059 = vunpack.c.l.b16 %v2020
        %v2060 = vunpack.c.l.b16 %v2021
        %v2061 = vunpack.c.l.b16 %v2022
        %v2062 = vunpack.c.l.b16 %v2023
        %v2063 = vunpack.c.l.b16 %v2024
        %v2064 = vunpack.c.l.b16 %v2025
        %v2065 = vpack.c.b16 %v2050, %v2049
        %v2066 = vpack.c.b16 %v2052, %v2051
        %v2067 = vpack.c.b16 %v2054, %v2053
        %v2068 = vpack.c.b16 %v2056, %v2055
        %v2069 = vpack.c.b16 %v2058, %v2057
        %v2070 = vpack.c.b16 %v2060, %v2059
        %v2071 = vpack.c.b16 %v2062, %v2061
        %v2072 = vpack.c.b16 %v2064, %v2063
        %2081 = vmatprep.subr.bf16.mxu0 0
        %2082 = vmatpush1.bf16.msra.mxu0 %v2065
        %2083 = vmatprep.subr.bf16.mxu0 0
        %2084 = vmatpush1.bf16.msra.mxu0 %v2066
        %2085 = vmatprep.subr.bf16.mxu0 0
        %2086 = vmatpush1.bf16.msra.mxu0 %v2067
        %2087 = vmatprep.subr.bf16.mxu0 0
        %2088 = vmatpush1.bf16.msra.mxu0 %v2068
        %2089 = vmatprep.subr.bf16.mxu0 0
        %2090 = vmatpush1.bf16.msra.mxu0 %v2069
        %2091 = vmatprep.subr.bf16.mxu0 0
        %2092 = vmatpush1.bf16.msra.mxu0 %v2070
        %2093 = vmatprep.subr.bf16.mxu0 0
        %2094 = vmatpush1.bf16.msra.mxu0 %v2071
        %2095 = vmatprep.subr.bf16.mxu0 0
        %2096 = vmatpush1.bf16.msra.mxu0 %v2072
        %2097 = vmatprep.subr.bf16.mxu0 0
        %2098 = vmatpush1.bf16.msra.mxu0 0
        %2099 = vmatprep.subr.bf16.mxu0 0
        %2100 = vmatpush1.bf16.msra.mxu0 0
        %2101 = vmatprep.subr.bf16.mxu0 0
        %2102 = vmatpush1.bf16.msra.mxu0 0
        %2103 = vmatprep.subr.bf16.mxu0 0
        %2104 = vmatpush1.bf16.msra.mxu0 0
        %2105 = vmatprep.subr.bf16.mxu0 0
        %2106 = vmatpush1.bf16.msra.mxu0 0
        %2107 = vmatprep.subr.bf16.mxu0 0
        %2108 = vmatpush1.bf16.msra.mxu0 0
        %2109 = vmatprep.subr.bf16.mxu0 0
        %2110 = vmatpush1.bf16.msra.mxu0 0
        %2111 = vmatprep.subr.bf16.mxu0 0
        %2112 = vmatpush1.bf16.msra.mxu0 0
        %2113 = vmatprep.mubr.bf16.mxu0 0
        %2114 = vmatmul.mubr.bf16.gmra.mrb[0].mxu0 %v2031
        %v2115 = vpop.f32.mrb[0].mxu0
        %v2116 = vadd.f32 0.0, %v2115
        %v2117 = vpop.f32.mrb[0].mxu0
        %v2118 = vpop.f32.mrb[0].mxu0
        %v2119 = vadd.f32 0.0, %v2118
        %v2120 = vpop.f32.mrb[0].mxu0
        %2121 = vdwg.mxu0
        %v2122 = vadd.f32 %v2007, %v2116
        %v2123 = vadd.f32 %v2008, %v2119
        %s2124 = scalar_lea.vmem %s5, 320
        %v2125 = vld [vmem:[%s2124] sm:$0xf]
        %v2126 = vld [vmem:[%s2124 + $0x4] sm:$0xf]
        %v2127 = vld [vmem:[%s2124 + $0x8] sm:$0xf]
        %v2128 = vld [vmem:[%s2124 + $0xc] sm:$0xf]
        %v2129 = vld [vmem:[%s2124 + $0x10] sm:$0xf]
        %v2130 = vld [vmem:[%s2124 + $0x14] sm:$0xf]
        %v2131 = vld [vmem:[%s2124 + $0x18] sm:$0xf]
        %v2132 = vld [vmem:[%s2124 + $0x1c] sm:$0xf]
        %v2133 = vld [vmem:[%s2124 + $0x20] sm:$0xf]
        %v2134 = vld [vmem:[%s2124 + $0x24] sm:$0xf]
        %v2135 = vld [vmem:[%s2124 + $0x28] sm:$0xf]
        %v2136 = vld [vmem:[%s2124 + $0x2c] sm:$0xf]
        %v2137 = vld [vmem:[%s2124 + $0x30] sm:$0xf]
        %v2138 = vld [vmem:[%s2124 + $0x34] sm:$0xf]
        %v2139 = vld [vmem:[%s2124 + $0x38] sm:$0xf]
        %v2140 = vld [vmem:[%s2124 + $0x3c] sm:$0xf]
        %2141 = vrot.lane.b32.xlu0 %v1777, 112
        %v2142 = vpop.permute.xlu0 %2141
        %2143 = vrot.lane.b32.xlu0 %v1789, 112
        %v2144 = vpop.permute.xlu0 %2143
        %v2145 = vsel %vm2030, %v2142, %v2144
        %v2163 = vunpack.c.l.b16 %v2125
        %v2164 = vunpack.c.l.b16 %v2126
        %v2165 = vunpack.c.l.b16 %v2127
        %v2166 = vunpack.c.l.b16 %v2128
        %v2167 = vunpack.c.l.b16 %v2129
        %v2168 = vunpack.c.l.b16 %v2130
        %v2169 = vunpack.c.l.b16 %v2131
        %v2170 = vunpack.c.l.b16 %v2132
        %v2171 = vunpack.c.l.b16 %v2133
        %v2172 = vunpack.c.l.b16 %v2134
        %v2173 = vunpack.c.l.b16 %v2135
        %v2174 = vunpack.c.l.b16 %v2136
        %v2175 = vunpack.c.l.b16 %v2137
        %v2176 = vunpack.c.l.b16 %v2138
        %v2177 = vunpack.c.l.b16 %v2139
        %v2178 = vunpack.c.l.b16 %v2140
        %v2179 = vpack.c.b16 %v2164, %v2163
        %v2180 = vpack.c.b16 %v2166, %v2165
        %v2181 = vpack.c.b16 %v2168, %v2167
        %v2182 = vpack.c.b16 %v2170, %v2169
        %v2183 = vpack.c.b16 %v2172, %v2171
        %v2184 = vpack.c.b16 %v2174, %v2173
        %v2185 = vpack.c.b16 %v2176, %v2175
        %v2186 = vpack.c.b16 %v2178, %v2177
        %2195 = vmatprep.subr.bf16.mxu0 0
        %2196 = vmatpush1.bf16.msra.mxu0 %v2179
        %2197 = vmatprep.subr.bf16.mxu0 0
        %2198 = vmatpush1.bf16.msra.mxu0 %v2180
        %2199 = vmatprep.subr.bf16.mxu0 0
        %2200 = vmatpush1.bf16.msra.mxu0 %v2181
        %2201 = vmatprep.subr.bf16.mxu0 0
        %2202 = vmatpush1.bf16.msra.mxu0 %v2182
        %2203 = vmatprep.subr.bf16.mxu0 0
        %2204 = vmatpush1.bf16.msra.mxu0 %v2183
        %2205 = vmatprep.subr.bf16.mxu0 0
        %2206 = vmatpush1.bf16.msra.mxu0 %v2184
        %2207 = vmatprep.subr.bf16.mxu0 0
        %2208 = vmatpush1.bf16.msra.mxu0 %v2185
        %2209 = vmatprep.subr.bf16.mxu0 0
        %2210 = vmatpush1.bf16.msra.mxu0 %v2186
        %2211 = vmatprep.subr.bf16.mxu0 0
        %2212 = vmatpush1.bf16.msra.mxu0 0
        %2213 = vmatprep.subr.bf16.mxu0 0
        %2214 = vmatpush1.bf16.msra.mxu0 0
        %2215 = vmatprep.subr.bf16.mxu0 0
        %2216 = vmatpush1.bf16.msra.mxu0 0
        %2217 = vmatprep.subr.bf16.mxu0 0
        %2218 = vmatpush1.bf16.msra.mxu0 0
        %2219 = vmatprep.subr.bf16.mxu0 0
        %2220 = vmatpush1.bf16.msra.mxu0 0
        %2221 = vmatprep.subr.bf16.mxu0 0
        %2222 = vmatpush1.bf16.msra.mxu0 0
        %2223 = vmatprep.subr.bf16.mxu0 0
        %2224 = vmatpush1.bf16.msra.mxu0 0
        %2225 = vmatprep.subr.bf16.mxu0 0
        %2226 = vmatpush1.bf16.msra.mxu0 0
        %2227 = vmatprep.mubr.bf16.mxu0 0
        %2228 = vmatmul.mubr.bf16.gmra.mrb[0].mxu0 %v2145
        %v2229 = vpop.f32.mrb[0].mxu0
        %v2230 = vadd.f32 0.0, %v2229
        %v2231 = vpop.f32.mrb[0].mxu0
        %v2232 = vpop.f32.mrb[0].mxu0
        %v2233 = vadd.f32 0.0, %v2232
        %v2234 = vpop.f32.mrb[0].mxu0
        %2235 = vdwg.mxu0
        %v2236 = vadd.f32 %v2122, %v2230
        %v2237 = vadd.f32 %v2123, %v2233
        %s2238 = scalar_lea.vmem %s5, 512
        %v2239 = vld [vmem:[%s2238] sm:$0xf]
        %v2240 = vld [vmem:[%s2238 + $0x4] sm:$0xf]
        %v2241 = vld [vmem:[%s2238 + $0x8] sm:$0xf]
        %v2242 = vld [vmem:[%s2238 + $0xc] sm:$0xf]
        %v2243 = vld [vmem:[%s2238 + $0x10] sm:$0xf]
        %v2244 = vld [vmem:[%s2238 + $0x14] sm:$0xf]
        %v2245 = vld [vmem:[%s2238 + $0x18] sm:$0xf]
        %v2246 = vld [vmem:[%s2238 + $0x1c] sm:$0xf]
        %v2247 = vld [vmem:[%s2238 + $0x20] sm:$0xf]
        %v2248 = vld [vmem:[%s2238 + $0x24] sm:$0xf]
        %v2249 = vld [vmem:[%s2238 + $0x28] sm:$0xf]
        %v2250 = vld [vmem:[%s2238 + $0x2c] sm:$0xf]
        %v2251 = vld [vmem:[%s2238 + $0x30] sm:$0xf]
        %v2252 = vld [vmem:[%s2238 + $0x34] sm:$0xf]
        %v2253 = vld [vmem:[%s2238 + $0x38] sm:$0xf]
        %v2254 = vld [vmem:[%s2238 + $0x3c] sm:$0xf]
        %2255 = vrot.lane.b32.xlu0 %v1908, 112
        %v2256 = vpop.permute.xlu0 %2255
        %2257 = vrot.lane.b32.xlu0 %v1911, 112
        %v2258 = vpop.permute.xlu0 %2257
        %v2259 = vsel %vm2030, %v2256, %v2258
        %v2277 = vunpack.c.l.b16 %v2239
        %v2278 = vunpack.c.l.b16 %v2240
        %v2279 = vunpack.c.l.b16 %v2241
        %v2280 = vunpack.c.l.b16 %v2242
        %v2281 = vunpack.c.l.b16 %v2243
        %v2282 = vunpack.c.l.b16 %v2244
        %v2283 = vunpack.c.l.b16 %v2245
        %v2284 = vunpack.c.l.b16 %v2246
        %v2285 = vunpack.c.l.b16 %v2247
        %v2286 = vunpack.c.l.b16 %v2248
        %v2287 = vunpack.c.l.b16 %v2249
        %v2288 = vunpack.c.l.b16 %v2250
        %v2289 = vunpack.c.l.b16 %v2251
        %v2290 = vunpack.c.l.b16 %v2252
        %v2291 = vunpack.c.l.b16 %v2253
        %v2292 = vunpack.c.l.b16 %v2254
        %v2293 = vpack.c.b16 %v2278, %v2277
        %v2294 = vpack.c.b16 %v2280, %v2279
        %v2295 = vpack.c.b16 %v2282, %v2281
        %v2296 = vpack.c.b16 %v2284, %v2283
        %v2297 = vpack.c.b16 %v2286, %v2285
        %v2298 = vpack.c.b16 %v2288, %v2287
        %v2299 = vpack.c.b16 %v2290, %v2289
        %v2300 = vpack.c.b16 %v2292, %v2291
        %2309 = vmatprep.subr.bf16.mxu0 0
        %2310 = vmatpush1.bf16.msra.mxu0 %v2293
        %2311 = vmatprep.subr.bf16.mxu0 0
        %2312 = vmatpush1.bf16.msra.mxu0 %v2294
        %2313 = vmatprep.subr.bf16.mxu0 0
        %2314 = vmatpush1.bf16.msra.mxu0 %v2295
        %2315 = vmatprep.subr.bf16.mxu0 0
        %2316 = vmatpush1.bf16.msra.mxu0 %v2296
        %2317 = vmatprep.subr.bf16.mxu0 0
        %2318 = vmatpush1.bf16.msra.mxu0 %v2297
        %2319 = vmatprep.subr.bf16.mxu0 0
        %2320 = vmatpush1.bf16.msra.mxu0 %v2298
        %2321 = vmatprep.subr.bf16.mxu0 0
        %2322 = vmatpush1.bf16.msra.mxu0 %v2299
        %2323 = vmatprep.subr.bf16.mxu0 0
        %2324 = vmatpush1.bf16.msra.mxu0 %v2300
        %2325 = vmatprep.subr.bf16.mxu0 0
        %2326 = vmatpush1.bf16.msra.mxu0 0
        %2327 = vmatprep.subr.bf16.mxu0 0
        %2328 = vmatpush1.bf16.msra.mxu0 0
        %2329 = vmatprep.subr.bf16.mxu0 0
        %2330 = vmatpush1.bf16.msra.mxu0 0
        %2331 = vmatprep.subr.bf16.mxu0 0
        %2332 = vmatpush1.bf16.msra.mxu0 0
        %2333 = vmatprep.subr.bf16.mxu0 0
        %2334 = vmatpush1.bf16.msra.mxu0 0
        %2335 = vmatprep.subr.bf16.mxu0 0
        %2336 = vmatpush1.bf16.msra.mxu0 0
        %2337 = vmatprep.subr.bf16.mxu0 0
        %2338 = vmatpush1.bf16.msra.mxu0 0
        %2339 = vmatprep.subr.bf16.mxu0 0
        %2340 = vmatpush1.bf16.msra.mxu0 0
        %2341 = vmatprep.mubr.bf16.mxu0 0
        %2342 = vmatmul.mubr.bf16.gmra.mrb[0].mxu0 %v2259
        %v2343 = vpop.f32.mrb[0].mxu0
        %v2344 = vadd.f32 0.0, %v2343
        %v2345 = vpop.f32.mrb[0].mxu0
        %v2346 = vpop.f32.mrb[0].mxu0
        %v2347 = vadd.f32 0.0, %v2346
        %v2348 = vpop.f32.mrb[0].mxu0
        %2349 = vdwg.mxu0
        %v2350 = vadd.f32 %v2236, %v2344
        %v2351 = vadd.f32 %v2237, %v2347
        %v2352 = vld [vmem:[%s6] sm:$0x1]
        %v2354 = vlaneseq
        %v2355 = vshrl.u32 %v2354, 7
        %v2356 = vsub.s32 0, %v2355
        %v2357 = vrot.slane %v2352, %v2356
        %v2359 = vadd.f32 %v2350, %v2357
        %v2360 = vadd.f32 %v2351, %v2357
        %s2361 = sld [smem:[#allocation4 + $0x1]]
        %v2362 = vld [vmem:[%s436] sm:$0xff]
        %v2363 = vld [vmem:[%s436 + $0x8] sm:$0xff]
        %v2364 = vstv %s2361
        %v2365 = vmul.f32 %v2364, %v2362
        %v2366 = vmul.f32 %v2364, %v2363
        %v2367 = vadd.f32 %v2359, %v2365
        %v2368 = vadd.f32 %v2360, %v2366
        %vm2369 = vcmp.ge.f32.partialorder %v2367, 0.0
        %vm2370 = vcmp.ge.f32.partialorder %v2368, 0.0
        %v2371 = vmul.f32 %v2367, 0.2
        %v2372 = vmul.f32 %v2368, 0.2
        %v2373 = vsel %vm2369, %v2367, %v2371
        %v2374 = vsel %vm2370, %v2368, %v2372
        %2375 = vst [vmem:[%s441] sm:$0xff] %v2373
        %2376 = vst [vmem:[%s441 + $0x8] sm:$0xff] %v2374
        %p2377 = scmp.lt.s32.totalorder %s22, 1
        %s2378 = scalar_select %p2377, %s22, 1
        %s2379 = smul.addr %s2378, 2
        %s2380 = smul.addr %s2379, 8
        %s2381 = scalar_lea.vmem %s10, %s2380
        // Predicated region
        $region65: #{styled_conv_block.1} parent=59 // pred_check
          %p2382 = pneg %p275
        $region66: #{styled_conv_block.1} parent=59 // pred_check_branch
          %2384 = sbr.rel (%p2382) target = $region68
        $region67: #{styled_conv_block.1} parent=59 // pred_region
          _
        $region68: #{styled_conv_block.1} parent=59 // pred_fallthru
          _
      $region60: #{styled_conv_block.1} parent=5 // pred_fallthru
        _
      %p2385 = scmp.le.s32.totalorder 2, %s17
      // Predicated region
      $region69: #{styled_conv_block.1} parent=5 // pred_check
        %p2386 = pneg %p2385
      $region70: #{styled_conv_block.1} parent=5 // pred_check_branch
        %2388 = sbr.rel (%p2386) target = $region72
      $region71: #{styled_conv_block.1} parent=5 // pred_region
        %s2389 = ssub.s32 %s17, 2
        // Predicated region
        $region73: #{styled_conv_block.1} parent=71 // pred_check
          %p2390 = pneg %p281
        $region74: #{styled_conv_block.1} parent=71 // pred_check_branch
          %2392 = sbr.rel (%p2390) target = $region76
        $region75: #{styled_conv_block.1} parent=71 // pred_region
          %p2393 = scmp.lt.s32.totalorder %s23, 1
          %s2394 = scalar_select %p2393, %s23, 1
          %s2395 = smul.addr %s2394, 2
          %s2396 = smul.addr %s2395, 8
          %s2397 = scalar_lea.vmem %s10, %s2396
        $region76: #{styled_conv_block.1} parent=71 // pred_fallthru
          _
      $region72: #{styled_conv_block.1} parent=5 // pred_fallthru
        _
    $region6: #{styled_conv_block.1} parent=1 // loop_footer
      %s21 = sadd.s32 1, %s17
    $region7: #{styled_conv_block.1} parent=1 // loop_footer_branch
      %16 = sbr.rel target = $region3
    $region8: #{styled_conv_block.1} parent=1 // loop_exit
      _
    %2398 = vsyncpa [#allocation5], 1
    %s2399 = scalar_lea.sflag [#allocation5], 1
    %2400 = vsyncpa %s2399, 1

</llo_original>
